<compile_context>
chip_gen: v7x
topology: tpu7x:2x2x1
jax: 0.10.0
libtpu: 0.0.40
codegen_flags: <defaults>
</compile_context>

<pallas_src>
import functools

import numpy as np
import jax
import jax.numpy as jnp
from jax import lax
from jax.experimental import pallas as pl
from jax.experimental.pallas import tpu as pltpu


# ----------------------------------------------------------------------------
# Kernel factory: one grid step == `Bblk` images, full (halo-padded) extent.
# ----------------------------------------------------------------------------
def _make_kernel(*, Bblk, H, W, Cin, hidden, Cout, stride, expand, use_res,
                 mm_dtype):
  Hp, Wp = H + 2, W + 2
  Np = Wp * hidden
  Ho = (H - 1) // stride + 1
  Wo = (W - 1) // stride + 1

  def mm(a, b):
    return jnp.dot(a.astype(mm_dtype), b.astype(mm_dtype),
                   preferred_element_type=jnp.float32)

  def kernel(*refs):
    it = iter(refs)
    x_ref = next(it)
    if expand:
      we_ref = next(it)
      s1_ref, b1_ref, a1_ref = next(it), next(it), next(it)
      mask_ref = next(it)
    if stride == 2:
      r_ref = next(it)
    tap_ref = next(it)
    s2_ref, b2_ref, a2_ref = next(it), next(it), next(it)
    wp_ref, s3_ref, b3_ref = next(it), next(it), next(it)
    o_ref = next(it)

    xv = x_ref[...]                                   # (Bblk, Hp, Wp*Cin), f32

    # ---- 1x1 pointwise expansion + BN + PReLU (MXU + f32 VPU epilogue) ----
    if expand:
      h = mm(xv.reshape(Bblk * Hp, Wp * Cin), we_ref[...])     # (Bblk*Hp, Np)
      h = h * s1_ref[...] + b1_ref[...]
      h = jnp.where(h > 0, h, a1_ref[...] * h)
      # Re-zero the conv halo (BN bias / PReLU made padded pixels nonzero).
      h3 = h.reshape(Bblk, Hp, Np) * mask_ref[...]
    else:
      h3 = xv                                         # hidden == Cin; halo already 0

    # ---- 3x3 depthwise conv ----
    # Vertical taps: static row slices (stride 1) or a tiny per-image selection
    # matmul batched over the block (stride 2).  Horizontal taps: per-channel tap
    # vectors on the VPU over lane slices of the padded width; the horizontal
    # stride is folded into the projection weight.
    if stride == 1:
      hv = [h3[:, dy:dy + Ho, :].reshape(Bblk * Ho, Np) for dy in range(3)]
    else:
      h_mm = h3.astype(mm_dtype)                      # cast once, reused 3x
      hv = []
      for dy in range(3):
        r_b = jnp.broadcast_to(r_ref[dy], (Bblk, Ho, Hp))
        v = lax.dot_general(r_b, h_mm, (((2,), (1,)), ((0,), (0,))),
                            preferred_element_type=jnp.float32)
        hv.append(v.reshape(Bblk * Ho, Np))

    dw = None
    for dx in range(3):
      acc = (hv[0] * tap_ref[dx] + hv[1] * tap_ref[3 + dx]
             + hv[2] * tap_ref[6 + dx])               # (Bblk*Ho, Np), f32 VPU
      term = acc[:, dx * hidden:dx * hidden + W * hidden]
      dw = term if dw is None else dw + term
    dw = dw * s2_ref[...] + b2_ref[...]
    dw = jnp.where(dw > 0, dw, a2_ref[...] * dw)      # PReLU

    # ---- 1x1 linear projection + BN (horizontal stride folded into wp) ----
    y = mm(dw, wp_ref[...])                           # (Bblk*Ho, Wo*Cout)
    y = y * s3_ref[...] + b3_ref[...]

    if use_res:                                       # stride == 1 and Cin == Cout
      xc = xv[:, 1:1 + H, Cin:Cin + W * Cin].reshape(Bblk * H, W * Cin)
      y = y + xc

    o_ref[...] = y.reshape(Bblk, Ho, Wo * Cout).astype(o_ref.dtype)

  return kernel


# ----------------------------------------------------------------------------
# Constant folding (cache structure-only pieces; call fold_params once per layer).
# ----------------------------------------------------------------------------
@functools.lru_cache(maxsize=None)
def _halo_mask_np(Hp, Np, hidden):
  m = np.ones((Hp, Np), np.float32)
  m[0, :] = 0.0
  m[-1, :] = 0.0
  m[:, :hidden] = 0.0
  m[:, Np - hidden:] = 0.0
  return m


@functools.lru_cache(maxsize=None)
def _row_select_np(H, stride):
  """(3, Ho, H+2) {0,1}: r[dy, ho, stride*ho + dy] = 1 (padded row indexing)."""
  Ho = (H - 1) // stride + 1
  r = np.zeros((3, Ho, H + 2), np.float32)
  for dy in range(3):
    for ho in range(Ho):
      r[dy, ho, stride * ho + dy] = 1.0
  return r


@functools.lru_cache(maxsize=None)
def _col_select_np(W, stride):
  """(W, Wo) {0,1}: s[stride*wo, wo] = 1 -- horizontal stride folded into wp."""
  Wo = (W - 1) // stride + 1
  s = np.zeros((W, Wo), np.float32)
  for wo in range(Wo):
    s[stride * wo, wo] = 1.0
  return s


def fold_params(p, *, H, W, stride, expand_ratio, matmul_dtype=jnp.bfloat16):
  """Builds the kernel's constant operands once; reuse across calls per layer."""
  hidden, Cout = p["w3"].shape
  expand = expand_ratio != 1
  Hp, Wp = H + 2, W + 2
  Np = Wp * hidden
  Wo = (W - 1) // stride + 1

  consts = []
  if expand:
    we = jnp.kron(jnp.eye(Wp, dtype=jnp.float32), p["w1"]).astype(matmul_dtype)
    consts += [we,
               jnp.tile(p["s1"], (1, Wp)), jnp.tile(p["b1"], (1, Wp)),
               jnp.tile(p["a1"], (1, Wp)),
               jnp.asarray(_halo_mask_np(Hp, Np, hidden))]
  if stride == 2:
    consts.append(jnp.asarray(_row_select_np(H, stride)).astype(matmul_dtype))
  taps = jnp.tile(p["wdw9"].reshape(9, 1, hidden), (1, 1, Wp))   # (9, 1, Np), f32
  wp = jnp.kron(jnp.asarray(_col_select_np(W, stride)),
                p["w3"]).astype(matmul_dtype)                    # (W*hid, Wo*Cout)
  consts += [taps,
             jnp.tile(p["s2"], (1, W)), jnp.tile(p["b2"], (1, W)),
             jnp.tile(p["a2"], (1, W)),
             wp,
             jnp.tile(p["s3"], (1, Wo)), jnp.tile(p["b3"], (1, Wo))]
  return tuple(consts)


def _vmem_capacity_bytes():
  try:
    return int(pltpu.get_tpu_info().vmem_capacity_bytes)
  except Exception:
    return 128 * 1024 * 1024


# ----------------------------------------------------------------------------
# NHWC entry point (preferred layout; keep the network channels-last).
# ----------------------------------------------------------------------------
def inverted_residual_nhwc(x_nhwc, p, *, stride, expand_ratio, batch_block=None,
                           matmul_dtype=jnp.bfloat16, folded=None):
  assert stride in (1, 2)
  B, H, W, Cin = x_nhwc.shape
  hidden, Cout = p["w3"].shape
  expand = expand_ratio != 1
  if not expand:
    assert hidden == Cin, "expand_ratio == 1 requires hidden_dim == inp"
  Hp, Wp = H + 2, W + 2
  Np = Wp * hidden
  Ho = (H - 1) // stride + 1
  Wo = (W - 1) // stride + 1
  use_res = (stride == 1 and Cin == Cout)
  # TODO(synk): pad Cout when Wo*Cout is not a multiple of 128 so the final store
  #             stays lane-dense (unmasked vst); demo shapes are already 128-wide.

  if folded is None:
    folded = fold_params(p, H=H, W=W, stride=stride, expand_ratio=expand_ratio,
                         matmul_dtype=matmul_dtype)

  # ---- per-generation VMEM budget -> batch block (fills the MXU M dimension) ----
  vmem_cap = _vmem_capacity_bytes()
  vmem_limit = min(vmem_cap * 3 // 4, 64 * 1024 * 1024)   # 48 MiB on v7x's 64 MiB
  if batch_block is None:
    const_bytes = sum(int(np.prod(c.shape)) * c.dtype.itemsize for c in folded)
    # Constants are double-buffered by the default pipeline.
    # TODO(synk): pipeline_mode=pl.Buffered(1) on the constant BlockSpecs once
    #             single-buffering of grid-invariant operands is safe everywhere.
    budget = vmem_limit - 2 * const_bytes - (6 << 20)      # headroom
    per_img = 4 * (2 * Hp * Wp * Cin + 2 * Ho * Wo * Cout + 6 * Hp * Np)
    batch_block = max(1, min(B, budget // per_img))
    if B >= 2:
      batch_block = min(batch_block, B // 2)   # >= 2 grid steps: both v7x cores busy
    while B % batch_block:
      batch_block -= 1
  assert B % batch_block == 0
  Bblk = batch_block

  # Halo-padded, lane-dense input slab (the pad IS the depthwise conv's zero halo).
  x_slab = jnp.pad(x_nhwc.astype(jnp.float32),
                   ((0, 0), (1, 1), (1, 1), (0, 0))).reshape(B, Hp, Wp * Cin)

  kern = _make_kernel(Bblk=Bblk, H=H, W=W, Cin=Cin, hidden=hidden, Cout=Cout,
                      stride=stride, expand=expand, use_res=use_res,
                      mm_dtype=matmul_dtype)

  def full(arr):
    nd = arr.ndim
    return pl.BlockSpec(arr.shape, lambda b, _nd=nd: (0,) * _nd)

  in_specs = [pl.BlockSpec((Bblk, Hp, Wp * Cin), lambda b: (b, 0, 0))]
  in_specs += [full(c) for c in folded]

  grid_spec = pltpu.PrefetchScalarGridSpec(
      num_scalar_prefetch=0,
      grid=(B // Bblk,),
      in_specs=in_specs,
      out_specs=pl.BlockSpec((Bblk, Ho, Wo * Cout), lambda b: (b, 0, 0)),
  )

  out_slab = pl.pallas_call(
      kern,
      out_shape=jax.ShapeDtypeStruct((B, Ho, Wo * Cout), jnp.float32),
      grid_spec=grid_spec,
      compiler_params=pltpu.CompilerParams(
          dimension_semantics=("parallel",),
          vmem_limit_bytes=vmem_limit),
  )(x_slab, *folded)

  return out_slab.reshape(B, Ho, Wo, Cout)


def inverted_residual(x_nchw, p, *, stride, expand_ratio, **kw):
  """NCHW wrapper for parity with the PyTorch module; real networks should stay
  NHWC end-to-end and call inverted_residual_nhwc directly."""
  x = jnp.transpose(x_nchw, (0, 2, 3, 1))
  y = inverted_residual_nhwc(x, p, stride=stride, expand_ratio=expand_ratio, **kw)
  return jnp.transpose(y, (0, 3, 1, 2))


# ----------------------------------------------------------------------------
# Deterministic parameter init (shapes implied by the module's __init__).
# ----------------------------------------------------------------------------
def _folded_bn(key, c, eps=1e-5):
  k1, k2, k3, k4 = jax.random.split(key, 4)
  gamma = 1.0 + 0.1 * jax.random.normal(k1, (c,), jnp.float32)
  beta = 0.1 * jax.random.normal(k2, (c,), jnp.float32)
  mean = 0.1 * jax.random.normal(k3, (c,), jnp.float32)
  var = jax.random.uniform(k4, (c,), jnp.float32, 0.5, 1.5)
  scale = gamma / jnp.sqrt(var + eps)
  bias = beta - mean * scale
  return scale[None, :], bias[None, :]


def init_params(key, inp, oup, expand_ratio):
  hidden = int(round(inp * expand_ratio))
  ks = jax.random.split(key, 8)
  s1, b1 = _folded_bn(ks[1], hidden)
  s2, b2 = _folded_bn(ks[3], hidden)
  s3, b3 = _folded_bn(ks[5], oup)
  return {
      # 1x1 expand conv weight (PyTorch (hidden, inp, 1, 1) stored as (inp, hidden))
      "w1": 0.2 * jax.random.normal(ks[0], (inp, hidden), jnp.float32),
      "s1": s1, "b1": b1,
      "a1": 0.25 + 0.05 * jax.random.normal(ks[6], (1, hidden), jnp.float32),
      # depthwise 3x3 weight (PyTorch (hidden, 1, 3, 3) stored as (9, hidden))
      "wdw9": (0.2 * jax.random.normal(ks[2], (3, 3, hidden), jnp.float32)
               ).reshape(9, hidden),
      "s2": s2, "b2": b2,
      "a2": 0.25 + 0.05 * jax.random.normal(ks[7], (1, hidden), jnp.float32),
      # 1x1 project conv weight (PyTorch (oup, hidden, 1, 1) stored as (hidden, oup))
      "w3": 0.2 * jax.random.normal(ks[4], (hidden, oup), jnp.float32),
      "s3": s3, "b3": b3,
  }


# ----------------------------------------------------------------------------
# Plain-JAX (lax.conv) reference for numerical validation.
# ----------------------------------------------------------------------------
def reference_nchw(x, p, *, stride, expand_ratio):
  dn = ("NCHW", "OIHW", "NCHW")

  def bn(t, s, b):
    return t * s[0][None, :, None, None] + b[0][None, :, None, None]

  def prelu(t, a):
    return jnp.where(t > 0, t, a[0][None, :, None, None] * t)

  h = x
  if expand_ratio != 1:
    w1_oihw = p["w1"].T[:, :, None, None]
    h = lax.conv_general_dilated(h, w1_oihw, (1, 1), "VALID",
                                 dimension_numbers=dn)
    h = prelu(bn(h, p["s1"], p["b1"]), p["a1"])
  hidden = h.shape[1]
  wdw = p["wdw9"].reshape(3, 3, hidden)
  wdw_oihw = jnp.transpose(wdw, (2, 0, 1))[:, None, :, :]
  d = lax.conv_general_dilated(h, wdw_oihw, (stride, stride),
                               ((1, 1), (1, 1)), dimension_numbers=dn,
                               feature_group_count=hidden)
  d = prelu(bn(d, p["s2"], p["b2"]), p["a2"])
  w3_oihw = p["w3"].T[:, :, None, None]
  y = lax.conv_general_dilated(d, w3_oihw, (1, 1), "VALID",
                               dimension_numbers=dn)
  y = bn(y, p["s3"], p["b3"])
  if stride == 1 and x.shape[1] == y.shape[1]:
    y = y + x
  return y


if __name__ == "__main__":
  key = jax.random.PRNGKey(0)

  # InvertedResidual(inp, oup, stride, expand_ratio) variants.
  configs = [
      (8, 8, 1, 4),    # residual path active; 16*8 = 128-lane-dense output
      (8, 16, 2, 4),   # stride-2 downsample, no residual
      (8, 8, 1, 1),    # expand_ratio == 1 (no expansion conv)
  ]
  B, H, W = 2, 16, 16

  for i, (inp, oup, stride, er) in enumerate(configs):
    kx, kp, key = jax.random.split(key, 3)
    x = jax.random.normal(kx, (B, inp, H, W), jnp.float32)   # NCHW, like PyTorch
    params = init_params(kp, inp, oup, er)
    ref = reference_nchw(x, params, stride=stride, expand_ratio=er)

    # Strict f32 parity + loose bf16 (MXU-native default) sanity check.
    for mm_dt, tol in ((jnp.float32, 1e-3), (jnp.bfloat16, 5e-2)):
      out = inverted_residual(x, params, stride=stride, expand_ratio=er,
                              matmul_dtype=mm_dt)
      out = jax.block_until_ready(out)
      assert out.shape == ref.shape, (out.shape, ref.shape)
      if not bool(jnp.allclose(out, ref, atol=tol, rtol=tol)):
        raise AssertionError(
            f"config {i} ({mm_dt.__name__}) mismatch, max abs err = "
            f"{float(jnp.max(jnp.abs(out - ref)))}")

  print("KERNEL_OK")
</pallas_src>

<mosaic_0001>
module attributes {stable_mosaic.version = 11 : i64} {
  func.func @kernel(%arg0: i32, %arg1: memref<1x18x144xf32, #tpu.memory_space<vmem>>, %arg2: memref<144x576xf32, #tpu.memory_space<vmem>>, %arg3: memref<1x576xf32, #tpu.memory_space<vmem>>, %arg4: memref<1x576xf32, #tpu.memory_space<vmem>>, %arg5: memref<1x576xf32, #tpu.memory_space<vmem>>, %arg6: memref<18x576xf32, #tpu.memory_space<vmem>>, %arg7: memref<9x1x576xf32, #tpu.memory_space<vmem>>, %arg8: memref<1x512xf32, #tpu.memory_space<vmem>>, %arg9: memref<1x512xf32, #tpu.memory_space<vmem>>, %arg10: memref<1x512xf32, #tpu.memory_space<vmem>>, %arg11: memref<512x128xf32, #tpu.memory_space<vmem>>, %arg12: memref<1x128xf32, #tpu.memory_space<vmem>>, %arg13: memref<1x128xf32, #tpu.memory_space<vmem>>, %arg14: memref<1x16x128xf32, #tpu.memory_space<vmem>>) attributes {dimension_semantics = [#tpu.dimension_semantics<parallel>], iteration_bounds = array<i64: 2>, scalar_prefetch = 0 : i64, scratch_operands = 0 : i64, tpu.core_type = #tpu.core_type<tc>, window_params = [{transform_indices = @transform_0, window_bounds = array<i64: 1, 18, 144>}, {pipeline_mode = #tpu.pipeline_mode<synchronous>, transform_indices = @transform_1, window_bounds = array<i64: 144, 576>}, {pipeline_mode = #tpu.pipeline_mode<synchronous>, transform_indices = @transform_2, window_bounds = array<i64: 1, 576>}, {pipeline_mode = #tpu.pipeline_mode<synchronous>, transform_indices = @transform_3, window_bounds = array<i64: 1, 576>}, {pipeline_mode = #tpu.pipeline_mode<synchronous>, transform_indices = @transform_4, window_bounds = array<i64: 1, 576>}, {pipeline_mode = #tpu.pipeline_mode<synchronous>, transform_indices = @transform_5, window_bounds = array<i64: 18, 576>}, {pipeline_mode = #tpu.pipeline_mode<synchronous>, transform_indices = @transform_6, window_bounds = array<i64: 9, 1, 576>}, {pipeline_mode = #tpu.pipeline_mode<synchronous>, transform_indices = @transform_7, window_bounds = array<i64: 1, 512>}, {pipeline_mode = #tpu.pipeline_mode<synchronous>, transform_indices = @transform_8, window_bounds = array<i64: 1, 512>}, {pipeline_mode = #tpu.pipeline_mode<synchronous>, transform_indices = @transform_9, window_bounds = array<i64: 1, 512>}, {pipeline_mode = #tpu.pipeline_mode<synchronous>, transform_indices = @transform_10, window_bounds = array<i64: 512, 128>}, {pipeline_mode = #tpu.pipeline_mode<synchronous>, transform_indices = @transform_11, window_bounds = array<i64: 1, 128>}, {pipeline_mode = #tpu.pipeline_mode<synchronous>, transform_indices = @transform_12, window_bounds = array<i64: 1, 128>}, {transform_indices = @transform_13, window_bounds = array<i64: 1, 16, 128>}]} {
    %c0 = arith.constant 0 : index
    %c0_0 = arith.constant 0 : index
    %c0_1 = arith.constant 0 : index
    %0 = vector.load %arg1[%c0, %c0_0, %c0_1] : memref<1x18x144xf32, #tpu.memory_space<vmem>>, vector<1x18x144xf32>
    %1 = vector.shape_cast %0 : vector<1x18x144xf32> to vector<18x144xf32>
    %c0_2 = arith.constant 0 : index
    %c0_3 = arith.constant 0 : index
    %2 = vector.load %arg2[%c0_2, %c0_3] : memref<144x576xf32, #tpu.memory_space<vmem>>, vector<144x576xf32>
    %cst = arith.constant dense<0.000000e+00> : vector<18x576xf32>
    %3 = tpu.matmul %1, %2, %cst {dimension_numbers = #tpu.dot_dimension_numbers<[1], [0], [0], [1], [0, 0, 1, 1], [], []>} : vector<18x144xf32>, vector<144x576xf32>, vector<18x576xf32> -> vector<18x576xf32>
    %c0_4 = arith.constant 0 : index
    %c0_5 = arith.constant 0 : index
    %4 = vector.load %arg3[%c0_4, %c0_5] : memref<1x576xf32, #tpu.memory_space<vmem>>, vector<1x576xf32>
    %5 = vector.broadcast %4 : vector<1x576xf32> to vector<18x576xf32>
    %6 = arith.mulf %3, %5 : vector<18x576xf32>
    %c0_6 = arith.constant 0 : index
    %c0_7 = arith.constant 0 : index
    %7 = vector.load %arg4[%c0_6, %c0_7] : memref<1x576xf32, #tpu.memory_space<vmem>>, vector<1x576xf32>
    %8 = vector.broadcast %7 : vector<1x576xf32> to vector<18x576xf32>
    %9 = arith.addf %6, %8 : vector<18x576xf32>
    %cst_8 = arith.constant 0.000000e+00 : f32
    %10 = vector.broadcast %cst_8 : f32 to vector<18x576xf32>
    %11 = arith.cmpf ogt, %9, %10 : vector<18x576xf32>
    %c0_9 = arith.constant 0 : index
    %c0_10 = arith.constant 0 : index
    %12 = vector.load %arg5[%c0_9, %c0_10] : memref<1x576xf32, #tpu.memory_space<vmem>>, vector<1x576xf32>
    %13 = vector.broadcast %12 : vector<1x576xf32> to vector<18x576xf32>
    %14 = arith.mulf %13, %9 : vector<18x576xf32>
    %15 = arith.select %11, %9, %14 : vector<18x576xi1>, vector<18x576xf32>
    %16 = vector.shape_cast %15 : vector<18x576xf32> to vector<1x18x576xf32>
    %c0_11 = arith.constant 0 : index
    %c0_12 = arith.constant 0 : index
    %17 = vector.load %arg6[%c0_11, %c0_12] : memref<18x576xf32, #tpu.memory_space<vmem>>, vector<18x576xf32>
    %18 = vector.shape_cast %17 : vector<18x576xf32> to vector<1x18x576xf32>
    %19 = arith.mulf %16, %18 : vector<1x18x576xf32>
    %20 = vector.extract_strided_slice %19 {offsets = [0, 0, 0], sizes = [1, 16, 576], strides = [1, 1, 1]} : vector<1x18x576xf32> to vector<1x16x576xf32>
    %21 = vector.shape_cast %20 : vector<1x16x576xf32> to vector<16x576xf32>
    %22 = vector.extract_strided_slice %19 {offsets = [0, 1, 0], sizes = [1, 16, 576], strides = [1, 1, 1]} : vector<1x18x576xf32> to vector<1x16x576xf32>
    %23 = vector.shape_cast %22 : vector<1x16x576xf32> to vector<16x576xf32>
    %24 = vector.extract_strided_slice %19 {offsets = [0, 2, 0], sizes = [1, 16, 576], strides = [1, 1, 1]} : vector<1x18x576xf32> to vector<1x16x576xf32>
    %25 = vector.shape_cast %24 : vector<1x16x576xf32> to vector<16x576xf32>
    %c0_13 = arith.constant 0 : index
    %c0_14 = arith.constant 0 : index
    %c0_15 = arith.constant 0 : index
    %26 = vector.load %arg7[%c0_13, %c0_14, %c0_15] : memref<9x1x576xf32, #tpu.memory_space<vmem>>, vector<1x1x576xf32>
    %27 = vector.shape_cast %26 : vector<1x1x576xf32> to vector<1x576xf32>
    %28 = vector.broadcast %27 : vector<1x576xf32> to vector<16x576xf32>
    %29 = arith.mulf %21, %28 : vector<16x576xf32>
    %c3 = arith.constant 3 : index
    %c0_16 = arith.constant 0 : index
    %c0_17 = arith.constant 0 : index
    %30 = vector.load %arg7[%c3, %c0_16, %c0_17] : memref<9x1x576xf32, #tpu.memory_space<vmem>>, vector<1x1x576xf32>
    %31 = vector.shape_cast %30 : vector<1x1x576xf32> to vector<1x576xf32>
    %32 = vector.broadcast %31 : vector<1x576xf32> to vector<16x576xf32>
    %33 = arith.mulf %23, %32 : vector<16x576xf32>
    %34 = arith.addf %29, %33 : vector<16x576xf32>
    %c6 = arith.constant 6 : index
    %c0_18 = arith.constant 0 : index
    %c0_19 = arith.constant 0 : index
    %35 = vector.load %arg7[%c6, %c0_18, %c0_19] : memref<9x1x576xf32, #tpu.memory_space<vmem>>, vector<1x1x576xf32>
    %36 = vector.shape_cast %35 : vector<1x1x576xf32> to vector<1x576xf32>
    %37 = vector.broadcast %36 : vector<1x576xf32> to vector<16x576xf32>
    %38 = arith.mulf %25, %37 : vector<16x576xf32>
    %39 = arith.addf %34, %38 : vector<16x576xf32>
    %40 = vector.extract_strided_slice %39 {offsets = [0, 0], sizes = [16, 512], strides = [1, 1]} : vector<16x576xf32> to vector<16x512xf32>
    %c1 = arith.constant 1 : index
    %c0_20 = arith.constant 0 : index
    %c0_21 = arith.constant 0 : index
    %41 = vector.load %arg7[%c1, %c0_20, %c0_21] : memref<9x1x576xf32, #tpu.memory_space<vmem>>, vector<1x1x576xf32>
    %42 = vector.shape_cast %41 : vector<1x1x576xf32> to vector<1x576xf32>
    %43 = vector.broadcast %42 : vector<1x576xf32> to vector<16x576xf32>
    %44 = arith.mulf %21, %43 : vector<16x576xf32>
    %c4 = arith.constant 4 : index
    %c0_22 = arith.constant 0 : index
    %c0_23 = arith.constant 0 : index
    %45 = vector.load %arg7[%c4, %c0_22, %c0_23] : memref<9x1x576xf32, #tpu.memory_space<vmem>>, vector<1x1x576xf32>
    %46 = vector.shape_cast %45 : vector<1x1x576xf32> to vector<1x576xf32>
    %47 = vector.broadcast %46 : vector<1x576xf32> to vector<16x576xf32>
    %48 = arith.mulf %23, %47 : vector<16x576xf32>
    %49 = arith.addf %44, %48 : vector<16x576xf32>
    %c7 = arith.constant 7 : index
    %c0_24 = arith.constant 0 : index
    %c0_25 = arith.constant 0 : index
    %50 = vector.load %arg7[%c7, %c0_24, %c0_25] : memref<9x1x576xf32, #tpu.memory_space<vmem>>, vector<1x1x576xf32>
    %51 = vector.shape_cast %50 : vector<1x1x576xf32> to vector<1x576xf32>
    %52 = vector.broadcast %51 : vector<1x576xf32> to vector<16x576xf32>
    %53 = arith.mulf %25, %52 : vector<16x576xf32>
    %54 = arith.addf %49, %53 : vector<16x576xf32>
    %55 = vector.extract_strided_slice %54 {offsets = [0, 32], sizes = [16, 512], strides = [1, 1]} : vector<16x576xf32> to vector<16x512xf32>
    %56 = arith.addf %40, %55 : vector<16x512xf32>
    %c2 = arith.constant 2 : index
    %c0_26 = arith.constant 0 : index
    %c0_27 = arith.constant 0 : index
    %57 = vector.load %arg7[%c2, %c0_26, %c0_27] : memref<9x1x576xf32, #tpu.memory_space<vmem>>, vector<1x1x576xf32>
    %58 = vector.shape_cast %57 : vector<1x1x576xf32> to vector<1x576xf32>
    %59 = vector.broadcast %58 : vector<1x576xf32> to vector<16x576xf32>
    %60 = arith.mulf %21, %59 : vector<16x576xf32>
    %c5 = arith.constant 5 : index
    %c0_28 = arith.constant 0 : index
    %c0_29 = arith.constant 0 : index
    %61 = vector.load %arg7[%c5, %c0_28, %c0_29] : memref<9x1x576xf32, #tpu.memory_space<vmem>>, vector<1x1x576xf32>
    %62 = vector.shape_cast %61 : vector<1x1x576xf32> to vector<1x576xf32>
    %63 = vector.broadcast %62 : vector<1x576xf32> to vector<16x576xf32>
    %64 = arith.mulf %23, %63 : vector<16x576xf32>
    %65 = arith.addf %60, %64 : vector<16x576xf32>
    %c8 = arith.constant 8 : index
    %c0_30 = arith.constant 0 : index
    %c0_31 = arith.constant 0 : index
    %66 = vector.load %arg7[%c8, %c0_30, %c0_31] : memref<9x1x576xf32, #tpu.memory_space<vmem>>, vector<1x1x576xf32>
    %67 = vector.shape_cast %66 : vector<1x1x576xf32> to vector<1x576xf32>
    %68 = vector.broadcast %67 : vector<1x576xf32> to vector<16x576xf32>
    %69 = arith.mulf %25, %68 : vector<16x576xf32>
    %70 = arith.addf %65, %69 : vector<16x576xf32>
    %71 = vector.extract_strided_slice %70 {offsets = [0, 64], sizes = [16, 512], strides = [1, 1]} : vector<16x576xf32> to vector<16x512xf32>
    %72 = arith.addf %56, %71 : vector<16x512xf32>
    %c0_32 = arith.constant 0 : index
    %c0_33 = arith.constant 0 : index
    %73 = vector.load %arg8[%c0_32, %c0_33] : memref<1x512xf32, #tpu.memory_space<vmem>>, vector<1x512xf32>
    %74 = vector.broadcast %73 : vector<1x512xf32> to vector<16x512xf32>
    %75 = arith.mulf %72, %74 : vector<16x512xf32>
    %c0_34 = arith.constant 0 : index
    %c0_35 = arith.constant 0 : index
    %76 = vector.load %arg9[%c0_34, %c0_35] : memref<1x512xf32, #tpu.memory_space<vmem>>, vector<1x512xf32>
    %77 = vector.broadcast %76 : vector<1x512xf32> to vector<16x512xf32>
    %78 = arith.addf %75, %77 : vector<16x512xf32>
    %cst_36 = arith.constant 0.000000e+00 : f32
    %79 = vector.broadcast %cst_36 : f32 to vector<16x512xf32>
    %80 = arith.cmpf ogt, %78, %79 : vector<16x512xf32>
    %c0_37 = arith.constant 0 : index
    %c0_38 = arith.constant 0 : index
    %81 = vector.load %arg10[%c0_37, %c0_38] : memref<1x512xf32, #tpu.memory_space<vmem>>, vector<1x512xf32>
    %82 = vector.broadcast %81 : vector<1x512xf32> to vector<16x512xf32>
    %83 = arith.mulf %82, %78 : vector<16x512xf32>
    %84 = arith.select %80, %78, %83 : vector<16x512xi1>, vector<16x512xf32>
    %c0_39 = arith.constant 0 : index
    %c0_40 = arith.constant 0 : index
    %85 = vector.load %arg11[%c0_39, %c0_40] : memref<512x128xf32, #tpu.memory_space<vmem>>, vector<512x128xf32>
    %cst_41 = arith.constant dense<0.000000e+00> : vector<16x128xf32>
    %86 = tpu.matmul %84, %85, %cst_41 {dimension_numbers = #tpu.dot_dimension_numbers<[1], [0], [0], [1], [0, 0, 1, 1], [], []>} : vector<16x512xf32>, vector<512x128xf32>, vector<16x128xf32> -> vector<16x128xf32>
    %c0_42 = arith.constant 0 : index
    %c0_43 = arith.constant 0 : index
    %87 = vector.load %arg12[%c0_42, %c0_43] : memref<1x128xf32, #tpu.memory_space<vmem>>, vector<1x128xf32>
    %88 = vector.broadcast %87 : vector<1x128xf32> to vector<16x128xf32>
    %89 = arith.mulf %86, %88 : vector<16x128xf32>
    %c0_44 = arith.constant 0 : index
    %c0_45 = arith.constant 0 : index
    %90 = vector.load %arg13[%c0_44, %c0_45] : memref<1x128xf32, #tpu.memory_space<vmem>>, vector<1x128xf32>
    %91 = vector.broadcast %90 : vector<1x128xf32> to vector<16x128xf32>
    %92 = arith.addf %89, %91 : vector<16x128xf32>
    %93 = vector.extract_strided_slice %0 {offsets = [0, 1, 8], sizes = [1, 16, 128], strides = [1, 1, 1]} : vector<1x18x144xf32> to vector<1x16x128xf32>
    %94 = vector.shape_cast %93 : vector<1x16x128xf32> to vector<16x128xf32>
    %95 = arith.addf %92, %94 : vector<16x128xf32>
    %96 = vector.shape_cast %95 : vector<16x128xf32> to vector<1x16x128xf32>
    %c0_46 = arith.constant 0 : index
    %c0_47 = arith.constant 0 : index
    %c0_48 = arith.constant 0 : index
    %97 = vector.load %arg14[%c0_46, %c0_47, %c0_48] : memref<1x16x128xf32, #tpu.memory_space<vmem>>, vector<1x16x128xf32>
    tpu.vector_store %arg14[%c0_46, %c0_47, %c0_48], %96 {strides = array<i32>} : memref<1x16x128xf32, #tpu.memory_space<vmem>>, vector<1x16x128xf32>,
    return
  }
  func.func @transform_0(%arg0: i32) -> (i32, i32, i32) {
    %c0_i32 = arith.constant 0 : i32
    %c0_i32_0 = arith.constant 0 : i32
    %c0_i32_1 = arith.constant 0 : i32
    return %arg0, %c0_i32, %c0_i32_0 : i32, i32, i32
  }
  func.func @transform_1(%arg0: i32) -> (i32, i32) {
    %c0_i32 = arith.constant 0 : i32
    %c0_i32_0 = arith.constant 0 : i32
    %c0_i32_1 = arith.constant 0 : i32
    return %c0_i32, %c0_i32_0 : i32, i32
  }
  func.func @transform_2(%arg0: i32) -> (i32, i32) {
    %c0_i32 = arith.constant 0 : i32
    %c0_i32_0 = arith.constant 0 : i32
    %c0_i32_1 = arith.constant 0 : i32
    return %c0_i32, %c0_i32_0 : i32, i32
  }
  func.func @transform_3(%arg0: i32) -> (i32, i32) {
    %c0_i32 = arith.constant 0 : i32
    %c0_i32_0 = arith.constant 0 : i32
    %c0_i32_1 = arith.constant 0 : i32
    return %c0_i32, %c0_i32_0 : i32, i32
  }
  func.func @transform_4(%arg0: i32) -> (i32, i32) {
    %c0_i32 = arith.constant 0 : i32
    %c0_i32_0 = arith.constant 0 : i32
    %c0_i32_1 = arith.constant 0 : i32
    return %c0_i32, %c0_i32_0 : i32, i32
  }
  func.func @transform_5(%arg0: i32) -> (i32, i32) {
    %c0_i32 = arith.constant 0 : i32
    %c0_i32_0 = arith.constant 0 : i32
    %c0_i32_1 = arith.constant 0 : i32
    return %c0_i32, %c0_i32_0 : i32, i32
  }
  func.func @transform_6(%arg0: i32) -> (i32, i32, i32) {
    %c0_i32 = arith.constant 0 : i32
    %c0_i32_0 = arith.constant 0 : i32
    %c0_i32_1 = arith.constant 0 : i32
    %c0_i32_2 = arith.constant 0 : i32
    return %c0_i32, %c0_i32_0, %c0_i32_1 : i32, i32, i32
  }
  func.func @transform_7(%arg0: i32) -> (i32, i32) {
    %c0_i32 = arith.constant 0 : i32
    %c0_i32_0 = arith.constant 0 : i32
    %c0_i32_1 = arith.constant 0 : i32
    return %c0_i32, %c0_i32_0 : i32, i32
  }
  func.func @transform_8(%arg0: i32) -> (i32, i32) {
    %c0_i32 = arith.constant 0 : i32
    %c0_i32_0 = arith.constant 0 : i32
    %c0_i32_1 = arith.constant 0 : i32
    return %c0_i32, %c0_i32_0 : i32, i32
  }
  func.func @transform_9(%arg0: i32) -> (i32, i32) {
    %c0_i32 = arith.constant 0 : i32
    %c0_i32_0 = arith.constant 0 : i32
    %c0_i32_1 = arith.constant 0 : i32
    return %c0_i32, %c0_i32_0 : i32, i32
  }
  func.func @transform_10(%arg0: i32) -> (i32, i32) {
    %c0_i32 = arith.constant 0 : i32
    %c0_i32_0 = arith.constant 0 : i32
    %c0_i32_1 = arith.constant 0 : i32
    return %c0_i32, %c0_i32_0 : i32, i32
  }
  func.func @transform_11(%arg0: i32) -> (i32, i32) {
    %c0_i32 = arith.constant 0 : i32
    %c0_i32_0 = arith.constant 0 : i32
    %c0_i32_1 = arith.constant 0 : i32
    return %c0_i32, %c0_i32_0 : i32, i32
  }
  func.func @transform_12(%arg0: i32) -> (i32, i32) {
    %c0_i32 = arith.constant 0 : i32
    %c0_i32_0 = arith.constant 0 : i32
    %c0_i32_1 = arith.constant 0 : i32
    return %c0_i32, %c0_i32_0 : i32, i32
  }
  func.func @transform_13(%arg0: i32) -> (i32, i32, i32) {
    %c0_i32 = arith.constant 0 : i32
    %c0_i32_0 = arith.constant 0 : i32
    %c0_i32_1 = arith.constant 0 : i32
    return %arg0, %c0_i32, %c0_i32_0 : i32, i32, i32
  }
}

</mosaic_0001>

<llo_original>
// kernel: tpu_custom_call.1
$region0: #{tpu_custom_call.1}
  #allocation0 [shape = 'u32[]', space=smem, size = 0x4, offset = 0x4, fixed_abs, tag = 'smem constant byte address 0x4 - core index']
  #allocation1 [shape = 'u32[144,128]{1,0:T(1,128)}', space=vmem, size = 0x12000, scoped, tag = 'internal scratch']
  %s0 = inlined_call_operand.hbm [shape: f32[2,18,144], index: 0, kind: input, shape index: {}]
  %s1 = inlined_call_operand.hbm [shape: f32[144,576], index: 1, kind: input, shape index: {}]
  %s2 = inlined_call_operand.hbm [shape: f32[1,576], index: 2, kind: input, shape index: {}]
  %s3 = inlined_call_operand.hbm [shape: f32[1,576], index: 3, kind: input, shape index: {}]
  %s4 = inlined_call_operand.hbm [shape: f32[1,576], index: 4, kind: input, shape index: {}]
  %s5 = inlined_call_operand.hbm [shape: f32[18,576], index: 5, kind: input, shape index: {}]
  %s6 = inlined_call_operand.hbm [shape: f32[9,1,576], index: 6, kind: input, shape index: {}]
  %s7 = inlined_call_operand.hbm [shape: f32[1,512], index: 7, kind: input, shape index: {}]
  %s8 = inlined_call_operand.hbm [shape: f32[1,512], index: 8, kind: input, shape index: {}]
  %s9 = inlined_call_operand.hbm [shape: f32[1,512], index: 9, kind: input, shape index: {}]
  %s10 = inlined_call_operand.hbm [shape: f32[512,128], index: 10, kind: input, shape index: {}]
  %s11 = inlined_call_operand.hbm [shape: f32[1,128], index: 11, kind: input, shape index: {}]
  %s12 = inlined_call_operand.hbm [shape: f32[1,128], index: 12, kind: input, shape index: {}]
  %s13 = inlined_call_operand.hbm [shape: f32[2,16,128], index: 13, kind: output, shape index: {}]
  %s14 = sld [smem:[#allocation0]]
  $region137: #{tpu_custom_call.1} parent=0
    _
  %s16 = ssub.s32 1, %s14
  %s17 = scalar_select 0, %s16, %s14
  $region1: #{tpu_custom_call.1} parent=0
    #allocation2 [shape = 'u8[49152]{0}', space=vmem, size = 0xc000, scoped, tag = 'input window, operand 0']
    #allocation3 [shape = 's32[2]{0}', space=sflag, size = 0x8, scoped, tag = 'scoped memory for tpu_custom_call.1']
    #allocation4 [shape = 's32[2]{0}', space=sflag, size = 0x8, scoped, tag = 'scoped memory for tpu_custom_call.1']
    #allocation5 [shape = 'u8[368640]{0}', space=vmem, size = 0x5a000, scoped, tag = 'input window, operand 1, single buffered']
    #allocation6 [shape = 's32[1]{0}', space=sflag, size = 0x4, scoped, tag = 'scoped memory for tpu_custom_call.1']
    #allocation7 [shape = 'u8[2560]{0}', space=vmem, size = 0xc00, scoped, tag = 'input window, operand 2, single buffered']
    #allocation8 [shape = 'u8[2560]{0}', space=vmem, size = 0xc00, scoped, tag = 'input window, operand 3, single buffered']
    #allocation9 [shape = 's32[1]{0}', space=sflag, size = 0x4, scoped, tag = 'scoped memory for tpu_custom_call.1']
    #allocation10 [shape = 'u8[2560]{0}', space=vmem, size = 0xc00, scoped, tag = 'input window, operand 4, single buffered']
    #allocation11 [shape = 'u8[61440]{0}', space=vmem, size = 0xf000, scoped, tag = 'input window, operand 5, single buffered']
    #allocation12 [shape = 's32[1]{0}', space=sflag, size = 0x4, scoped, tag = 'scoped memory for tpu_custom_call.1']
    #allocation13 [shape = 'u8[23040]{0}', space=vmem, size = 0x5c00, scoped, tag = 'input window, operand 6, single buffered']
    #allocation14 [shape = 'u8[2048]{0}', space=vmem, size = 0x800, scoped, tag = 'input window, operand 7, single buffered']
    #allocation15 [shape = 's32[1]{0}', space=sflag, size = 0x4, scoped, tag = 'scoped memory for tpu_custom_call.1']
    #allocation16 [shape = 'u8[2048]{0}', space=vmem, size = 0x800, scoped, tag = 'input window, operand 8, single buffered']
    #allocation17 [shape = 'u8[2048]{0}', space=vmem, size = 0x800, scoped, tag = 'input window, operand 9, single buffered']
    #allocation18 [shape = 's32[1]{0}', space=sflag, size = 0x4, scoped, tag = 'scoped memory for tpu_custom_call.1']
    #allocation19 [shape = 'u8[262144]{0}', space=vmem, size = 0x40000, scoped, tag = 'input window, operand 10, single buffered']
    #allocation20 [shape = 'u8[512]{0}', space=vmem, size = 0x400, scoped, tag = 'input window, operand 11, single buffered']
    #allocation21 [shape = 's32[1]{0}', space=sflag, size = 0x4, scoped, tag = 'scoped memory for tpu_custom_call.1']
    #allocation22 [shape = 'u8[512]{0}', space=vmem, size = 0x400, scoped, tag = 'input window, operand 12, single buffered']
    #allocation23 [shape = 'u8[16384]{0}', space=vmem, size = 0x4000, scoped, tag = 'output window, operand 0']
    %18 = vsyncpa [#allocation3], 0
    %s19 = scalar_lea.sflag [#allocation3], 1
    %20 = vsyncpa %s19, 0
    %21 = vsyncpa [#allocation6], 0
    %22 = vsyncpa [#allocation9], 0
    %23 = vsyncpa [#allocation12], 0
    %24 = vsyncpa [#allocation15], 0
    %25 = vsyncpa [#allocation18], 0
    %26 = vsyncpa [#allocation21], 0
    %27 = vsyncpa [#allocation4], 0
    %s28 = scalar_lea.sflag [#allocation4], 1
    %29 = vsyncpa %s28, 0
    loop: start=0, step=1, limit=4
    $region2: #{tpu_custom_call.1} parent=1 // loop_pre_header
      _
    $region3: #{tpu_custom_call.1} parent=1 // loop_header
      %s31 = sphi 0, %s35
      %p32 = scmp.ge.s32.totalorder %s31, 4
      %s41 = sphi 0, %s43
      %s44 = sphi 0, %s41
      %s45 = sphi 0, %s44
      %s61 = sphi 0, %s45
      %s65 = sphi 0, %s65
      %s67 = sphi 0, %s65
      %s68 = sphi 0, %s67
      %s82 = sphi 0, %s68
      %s86 = sphi 0, %s86
      %s88 = sphi 0, %s86
      %s89 = sphi 0, %s88
      %s103 = sphi 0, %s89
      %s107 = sphi 0, %s107
      %s109 = sphi 0, %s107
      %s110 = sphi 0, %s109
      %s124 = sphi 0, %s110
      %s128 = sphi 0, %s128
      %s130 = sphi 0, %s128
      %s131 = sphi 0, %s130
      %s145 = sphi 0, %s131
      %s149 = sphi 0, %s149
      %s151 = sphi 0, %s149
      %s152 = sphi 0, %s151
      %s166 = sphi 0, %s152
      %s170 = sphi 0, %s170
      %s172 = sphi 0, %s170
      %s173 = sphi 0, %s172
      %s187 = sphi 0, %s173
      %s191 = sphi 0, %s191
      %s193 = sphi 0, %s191
      %s194 = sphi 0, %s193
      %s208 = sphi 0, %s194
      %s212 = sphi 0, %s212
      %s214 = sphi 0, %s212
      %s215 = sphi 0, %s214
      %s229 = sphi 0, %s215
      %s233 = sphi 0, %s233
      %s235 = sphi 0, %s233
      %s236 = sphi 0, %s235
      %s250 = sphi 0, %s236
      %s254 = sphi 0, %s254
      %s256 = sphi 0, %s254
      %s257 = sphi 0, %s256
      %s271 = sphi 0, %s257
      %s275 = sphi 0, %s275
      %s277 = sphi 0, %s275
      %s278 = sphi 0, %s277
      %s292 = sphi 0, %s278
      %s296 = sphi 0, %s296
      %s298 = sphi 0, %s296
      %s299 = sphi 0, %s298
      %s313 = sphi 0, %s299
      %s319 = sphi 0, %s321
      %s322 = sphi 0, %s319
      %s323 = sphi 0, %s322
      %s339 = sphi 0, %s323
    $region4: #{tpu_custom_call.1} parent=1 // loop_header_branch
      %34 = sbr.rel (%p32) target = $region8
    $region5: #{tpu_custom_call.1} parent=1 // loop_body
      %s36 = ssub.s32 %s31, 1
      %s37 = ssub.s32 %s31, 2
      %s38 = sadd.s32 %s31, 1
      %s39 = ssub.s32 %s31, %s38
      %p40 = scmp.eq.s32.totalorder %s39, 0
      %s42 = sadd.s32 %s41, 1
      %s43 = scalar_select %p40, %s41, %s42
      %p46 = pneg %p40
      %p47 = scmp.eq.s32.totalorder %s31, 1
      %p48 = por %p46, %p47
      %p49 = scmp.ne.s32.totalorder %s41, %s44
      %p50 = scmp.eq.s32.totalorder %s31, 0
      %p51 = por %p49, %p50
      %p52 = scmp.ne.s32.totalorder %s41, %s44
      %p53 = scmp.eq.s32.totalorder %s36, 1
      %p54 = por %p52, %p53
      %p55 = scmp.ne.s32.totalorder %s44, %s45
      %p56 = scmp.eq.s32.totalorder %s36, 0
      %p57 = por %p55, %p56
      %p58 = scmp.ne.s32.totalorder %s44, %s45
      %p59 = scmp.eq.s32.totalorder %s37, 1
      %p60 = por %p58, %p59
      %p62 = scmp.ne.s32.totalorder %s45, %s61
      %p63 = scmp.eq.s32.totalorder %s37, 0
      %p64 = por %p62, %p63
      %s66 = sadd.s32 %s65, 1
      %p69 = scmp.eq.s32.totalorder %s31, 1
      %p70 = scmp.ne.s32.totalorder %s65, %s67
      %p71 = scmp.eq.s32.totalorder %s31, 0
      %p72 = por %p70, %p71
      %p73 = scmp.ne.s32.totalorder %s65, %s67
      %p74 = scmp.eq.s32.totalorder %s36, 1
      %p75 = por %p73, %p74
      %p76 = scmp.ne.s32.totalorder %s67, %s68
      %p77 = scmp.eq.s32.totalorder %s36, 0
      %p78 = por %p76, %p77
      %p79 = scmp.ne.s32.totalorder %s67, %s68
      %p80 = scmp.eq.s32.totalorder %s37, 1
      %p81 = por %p79, %p80
      %p83 = scmp.ne.s32.totalorder %s68, %s82
      %p84 = scmp.eq.s32.totalorder %s37, 0
      %p85 = por %p83, %p84
      %s87 = sadd.s32 %s86, 1
      %p90 = scmp.eq.s32.totalorder %s31, 1
      %p91 = scmp.ne.s32.totalorder %s86, %s88
      %p92 = scmp.eq.s32.totalorder %s31, 0
      %p93 = por %p91, %p92
      %p94 = scmp.ne.s32.totalorder %s86, %s88
      %p95 = scmp.eq.s32.totalorder %s36, 1
      %p96 = por %p94, %p95
      %p97 = scmp.ne.s32.totalorder %s88, %s89
      %p98 = scmp.eq.s32.totalorder %s36, 0
      %p99 = por %p97, %p98
      %p100 = scmp.ne.s32.totalorder %s88, %s89
      %p101 = scmp.eq.s32.totalorder %s37, 1
      %p102 = por %p100, %p101
      %p104 = scmp.ne.s32.totalorder %s89, %s103
      %p105 = scmp.eq.s32.totalorder %s37, 0
      %p106 = por %p104, %p105
      %s108 = sadd.s32 %s107, 1
      %p111 = scmp.eq.s32.totalorder %s31, 1
      %p112 = scmp.ne.s32.totalorder %s107, %s109
      %p113 = scmp.eq.s32.totalorder %s31, 0
      %p114 = por %p112, %p113
      %p115 = scmp.ne.s32.totalorder %s107, %s109
      %p116 = scmp.eq.s32.totalorder %s36, 1
      %p117 = por %p115, %p116
      %p118 = scmp.ne.s32.totalorder %s109, %s110
      %p119 = scmp.eq.s32.totalorder %s36, 0
      %p120 = por %p118, %p119
      %p121 = scmp.ne.s32.totalorder %s109, %s110
      %p122 = scmp.eq.s32.totalorder %s37, 1
      %p123 = por %p121, %p122
      %p125 = scmp.ne.s32.totalorder %s110, %s124
      %p126 = scmp.eq.s32.totalorder %s37, 0
      %p127 = por %p125, %p126
      %s129 = sadd.s32 %s128, 1
      %p132 = scmp.eq.s32.totalorder %s31, 1
      %p133 = scmp.ne.s32.totalorder %s128, %s130
      %p134 = scmp.eq.s32.totalorder %s31, 0
      %p135 = por %p133, %p134
      %p136 = scmp.ne.s32.totalorder %s128, %s130
      %p137 = scmp.eq.s32.totalorder %s36, 1
      %p138 = por %p136, %p137
      %p139 = scmp.ne.s32.totalorder %s130, %s131
      %p140 = scmp.eq.s32.totalorder %s36, 0
      %p141 = por %p139, %p140
      %p142 = scmp.ne.s32.totalorder %s130, %s131
      %p143 = scmp.eq.s32.totalorder %s37, 1
      %p144 = por %p142, %p143
      %p146 = scmp.ne.s32.totalorder %s131, %s145
      %p147 = scmp.eq.s32.totalorder %s37, 0
      %p148 = por %p146, %p147
      %s150 = sadd.s32 %s149, 1
      %p153 = scmp.eq.s32.totalorder %s31, 1
      %p154 = scmp.ne.s32.totalorder %s149, %s151
      %p155 = scmp.eq.s32.totalorder %s31, 0
      %p156 = por %p154, %p155
      %p157 = scmp.ne.s32.totalorder %s149, %s151
      %p158 = scmp.eq.s32.totalorder %s36, 1
      %p159 = por %p157, %p158
      %p160 = scmp.ne.s32.totalorder %s151, %s152
      %p161 = scmp.eq.s32.totalorder %s36, 0
      %p162 = por %p160, %p161
      %p163 = scmp.ne.s32.totalorder %s151, %s152
      %p164 = scmp.eq.s32.totalorder %s37, 1
      %p165 = por %p163, %p164
      %p167 = scmp.ne.s32.totalorder %s152, %s166
      %p168 = scmp.eq.s32.totalorder %s37, 0
      %p169 = por %p167, %p168
      %s171 = sadd.s32 %s170, 1
      %p174 = scmp.eq.s32.totalorder %s31, 1
      %p175 = scmp.ne.s32.totalorder %s170, %s172
      %p176 = scmp.eq.s32.totalorder %s31, 0
      %p177 = por %p175, %p176
      %p178 = scmp.ne.s32.totalorder %s170, %s172
      %p179 = scmp.eq.s32.totalorder %s36, 1
      %p180 = por %p178, %p179
      %p181 = scmp.ne.s32.totalorder %s172, %s173
      %p182 = scmp.eq.s32.totalorder %s36, 0
      %p183 = por %p181, %p182
      %p184 = scmp.ne.s32.totalorder %s172, %s173
      %p185 = scmp.eq.s32.totalorder %s37, 1
      %p186 = por %p184, %p185
      %p188 = scmp.ne.s32.totalorder %s173, %s187
      %p189 = scmp.eq.s32.totalorder %s37, 0
      %p190 = por %p188, %p189
      %s192 = sadd.s32 %s191, 1
      %p195 = scmp.eq.s32.totalorder %s31, 1
      %p196 = scmp.ne.s32.totalorder %s191, %s193
      %p197 = scmp.eq.s32.totalorder %s31, 0
      %p198 = por %p196, %p197
      %p199 = scmp.ne.s32.totalorder %s191, %s193
      %p200 = scmp.eq.s32.totalorder %s36, 1
      %p201 = por %p199, %p200
      %p202 = scmp.ne.s32.totalorder %s193, %s194
      %p203 = scmp.eq.s32.totalorder %s36, 0
      %p204 = por %p202, %p203
      %p205 = scmp.ne.s32.totalorder %s193, %s194
      %p206 = scmp.eq.s32.totalorder %s37, 1
      %p207 = por %p205, %p206
      %p209 = scmp.ne.s32.totalorder %s194, %s208
      %p210 = scmp.eq.s32.totalorder %s37, 0
      %p211 = por %p209, %p210
      %s213 = sadd.s32 %s212, 1
      %p216 = scmp.eq.s32.totalorder %s31, 1
      %p217 = scmp.ne.s32.totalorder %s212, %s214
      %p218 = scmp.eq.s32.totalorder %s31, 0
      %p219 = por %p217, %p218
      %p220 = scmp.ne.s32.totalorder %s212, %s214
      %p221 = scmp.eq.s32.totalorder %s36, 1
      %p222 = por %p220, %p221
      %p223 = scmp.ne.s32.totalorder %s214, %s215
      %p224 = scmp.eq.s32.totalorder %s36, 0
      %p225 = por %p223, %p224
      %p226 = scmp.ne.s32.totalorder %s214, %s215
      %p227 = scmp.eq.s32.totalorder %s37, 1
      %p228 = por %p226, %p227
      %p230 = scmp.ne.s32.totalorder %s215, %s229
      %p231 = scmp.eq.s32.totalorder %s37, 0
      %p232 = por %p230, %p231
      %s234 = sadd.s32 %s233, 1
      %p237 = scmp.eq.s32.totalorder %s31, 1
      %p238 = scmp.ne.s32.totalorder %s233, %s235
      %p239 = scmp.eq.s32.totalorder %s31, 0
      %p240 = por %p238, %p239
      %p241 = scmp.ne.s32.totalorder %s233, %s235
      %p242 = scmp.eq.s32.totalorder %s36, 1
      %p243 = por %p241, %p242
      %p244 = scmp.ne.s32.totalorder %s235, %s236
      %p245 = scmp.eq.s32.totalorder %s36, 0
      %p246 = por %p244, %p245
      %p247 = scmp.ne.s32.totalorder %s235, %s236
      %p248 = scmp.eq.s32.totalorder %s37, 1
      %p249 = por %p247, %p248
      %p251 = scmp.ne.s32.totalorder %s236, %s250
      %p252 = scmp.eq.s32.totalorder %s37, 0
      %p253 = por %p251, %p252
      %s255 = sadd.s32 %s254, 1
      %p258 = scmp.eq.s32.totalorder %s31, 1
      %p259 = scmp.ne.s32.totalorder %s254, %s256
      %p260 = scmp.eq.s32.totalorder %s31, 0
      %p261 = por %p259, %p260
      %p262 = scmp.ne.s32.totalorder %s254, %s256
      %p263 = scmp.eq.s32.totalorder %s36, 1
      %p264 = por %p262, %p263
      %p265 = scmp.ne.s32.totalorder %s256, %s257
      %p266 = scmp.eq.s32.totalorder %s36, 0
      %p267 = por %p265, %p266
      %p268 = scmp.ne.s32.totalorder %s256, %s257
      %p269 = scmp.eq.s32.totalorder %s37, 1
      %p270 = por %p268, %p269
      %p272 = scmp.ne.s32.totalorder %s257, %s271
      %p273 = scmp.eq.s32.totalorder %s37, 0
      %p274 = por %p272, %p273
      %s276 = sadd.s32 %s275, 1
      %p279 = scmp.eq.s32.totalorder %s31, 1
      %p280 = scmp.ne.s32.totalorder %s275, %s277
      %p281 = scmp.eq.s32.totalorder %s31, 0
      %p282 = por %p280, %p281
      %p283 = scmp.ne.s32.totalorder %s275, %s277
      %p284 = scmp.eq.s32.totalorder %s36, 1
      %p285 = por %p283, %p284
      %p286 = scmp.ne.s32.totalorder %s277, %s278
      %p287 = scmp.eq.s32.totalorder %s36, 0
      %p288 = por %p286, %p287
      %p289 = scmp.ne.s32.totalorder %s277, %s278
      %p290 = scmp.eq.s32.totalorder %s37, 1
      %p291 = por %p289, %p290
      %p293 = scmp.ne.s32.totalorder %s278, %s292
      %p294 = scmp.eq.s32.totalorder %s37, 0
      %p295 = por %p293, %p294
      %s297 = sadd.s32 %s296, 1
      %p300 = scmp.eq.s32.totalorder %s31, 1
      %p301 = scmp.ne.s32.totalorder %s296, %s298
      %p302 = scmp.eq.s32.totalorder %s31, 0
      %p303 = por %p301, %p302
      %p304 = scmp.ne.s32.totalorder %s296, %s298
      %p305 = scmp.eq.s32.totalorder %s36, 1
      %p306 = por %p304, %p305
      %p307 = scmp.ne.s32.totalorder %s298, %s299
      %p308 = scmp.eq.s32.totalorder %s36, 0
      %p309 = por %p307, %p308
      %p310 = scmp.ne.s32.totalorder %s298, %s299
      %p311 = scmp.eq.s32.totalorder %s37, 1
      %p312 = por %p310, %p311
      %p314 = scmp.ne.s32.totalorder %s299, %s313
      %p315 = scmp.eq.s32.totalorder %s37, 0
      %p316 = por %p314, %p315
      %s317 = ssub.s32 %s31, %s38
      %p318 = scmp.eq.s32.totalorder %s317, 0
      %s320 = sadd.s32 %s319, 1
      %s321 = scalar_select %p318, %s319, %s320
      %p324 = pneg %p318
      %p325 = scmp.eq.s32.totalorder %s31, 1
      %p326 = por %p324, %p325
      %p327 = scmp.ne.s32.totalorder %s319, %s322
      %p328 = scmp.eq.s32.totalorder %s31, 0
      %p329 = por %p327, %p328
      %p330 = scmp.ne.s32.totalorder %s319, %s322
      %p331 = scmp.eq.s32.totalorder %s36, 1
      %p332 = por %p330, %p331
      %p333 = scmp.ne.s32.totalorder %s322, %s323
      %p334 = scmp.eq.s32.totalorder %s36, 0
      %p335 = por %p333, %p334
      %p336 = scmp.ne.s32.totalorder %s322, %s323
      %p337 = scmp.eq.s32.totalorder %s37, 1
      %p338 = por %p336, %p337
      %p340 = scmp.ne.s32.totalorder %s323, %s339
      %p341 = scmp.eq.s32.totalorder %s37, 0
      %p342 = por %p340, %p341
      %p343 = scmp.le.s32.totalorder 1, %s31
      %p344 = scmp.lt.s32.totalorder %s31, 3
      %p345 = pnand %p343, %p344
      %p346 = pneg %p345
      // Predicated region
      $region9: #{tpu_custom_call.1} parent=5 // pred_check
        _
      $region10: #{tpu_custom_call.1} parent=5 // pred_check_branch
        %348 = sbr.rel (%p345) target = $region12
      $region11: #{tpu_custom_call.1} parent=5 // pred_region
        %s349 = ssub.s32 %s31, 1
        // Predicated region
        $region13: #{tpu_custom_call.1} parent=11 // pred_check
          %p350 = pneg %p78
        $region14: #{tpu_custom_call.1} parent=11 // pred_check_branch
          %352 = sbr.rel (%p350) target = $region16
        $region15: #{tpu_custom_call.1} parent=11 // pred_region
          %s354 = ssub.s32 11520, 11520
          %355 = vsyncadd [#allocation6], %s354
          %s356 = sshll.u32 [#allocation5], 4
          %s357 = int_to_ptr.vmem [resolvable:$true] %s356
          %362 = dma.hbm_to_vmem [thread:$0]  %s1, 11520, %s357, [#allocation6], 640, 640, 40
        $region16: #{tpu_custom_call.1} parent=11 // pred_fallthru
          _
        // Predicated region
        $region17: #{tpu_custom_call.1} parent=11 // pred_check
          %p363 = pneg %p99
        $region18: #{tpu_custom_call.1} parent=11 // pred_check_branch
          %365 = sbr.rel (%p363) target = $region20
        $region19: #{tpu_custom_call.1} parent=11 // pred_region
          %s367 = ssub.s32 80, 80
          %368 = vsyncadd [#allocation6], %s367
          %s370 = sshll.u32 [#allocation7], 4
          %s371 = int_to_ptr.vmem [resolvable:$true] %s370
          %373 = dma.hbm_to_vmem [thread:$0]  %s2, 80, %s371, [#allocation6]
        $region20: #{tpu_custom_call.1} parent=11 // pred_fallthru
          _
        // Predicated region
        $region21: #{tpu_custom_call.1} parent=11 // pred_check
          %p374 = pneg %p120
        $region22: #{tpu_custom_call.1} parent=11 // pred_check_branch
          %376 = sbr.rel (%p374) target = $region24
        $region23: #{tpu_custom_call.1} parent=11 // pred_region
          %s378 = ssub.s32 80, 80
          %379 = vsyncadd [#allocation9], %s378
          %s381 = sshll.u32 [#allocation8], 4
          %s382 = int_to_ptr.vmem [resolvable:$true] %s381
          %384 = dma.hbm_to_vmem [thread:$0]  %s3, 80, %s382, [#allocation9]
        $region24: #{tpu_custom_call.1} parent=11 // pred_fallthru
          _
        // Predicated region
        $region25: #{tpu_custom_call.1} parent=11 // pred_check
          %p385 = pneg %p141
        $region26: #{tpu_custom_call.1} parent=11 // pred_check_branch
          %387 = sbr.rel (%p385) target = $region28
        $region27: #{tpu_custom_call.1} parent=11 // pred_region
          %s389 = ssub.s32 80, 80
          %390 = vsyncadd [#allocation9], %s389
          %s392 = sshll.u32 [#allocation10], 4
          %s393 = int_to_ptr.vmem [resolvable:$true] %s392
          %395 = dma.hbm_to_vmem [thread:$0]  %s4, 80, %s393, [#allocation9]
        $region28: #{tpu_custom_call.1} parent=11 // pred_fallthru
          _
        // Predicated region
        $region29: #{tpu_custom_call.1} parent=11 // pred_check
          %p396 = pneg %p162
        $region30: #{tpu_custom_call.1} parent=11 // pred_check_branch
          %398 = sbr.rel (%p396) target = $region32
        $region31: #{tpu_custom_call.1} parent=11 // pred_region
          %s400 = ssub.s32 1920, 1920
          %401 = vsyncadd [#allocation12], %s400
          %s402 = sshll.u32 [#allocation11], 4
          %s403 = int_to_ptr.vmem [resolvable:$true] %s402
          %408 = dma.hbm_to_vmem [thread:$0]  %s5, 1920, %s403, [#allocation12], 640, 640, 40
        $region32: #{tpu_custom_call.1} parent=11 // pred_fallthru
          _
        // Predicated region
        $region33: #{tpu_custom_call.1} parent=11 // pred_check
          %p409 = pneg %p183
        $region34: #{tpu_custom_call.1} parent=11 // pred_check_branch
          %411 = sbr.rel (%p409) target = $region36
        $region35: #{tpu_custom_call.1} parent=11 // pred_region
          %s413 = ssub.s32 720, 720
          %414 = vsyncadd [#allocation12], %s413
          %s415 = sshll.u32 [#allocation13], 4
          %s416 = int_to_ptr.vmem [resolvable:$true] %s415
          %421 = dma.hbm_to_vmem [thread:$0]  %s6, 720, %s416, [#allocation12], 80, 80, 5
        $region36: #{tpu_custom_call.1} parent=11 // pred_fallthru
          _
        // Predicated region
        $region37: #{tpu_custom_call.1} parent=11 // pred_check
          %p422 = pneg %p204
        $region38: #{tpu_custom_call.1} parent=11 // pred_check_branch
          %424 = sbr.rel (%p422) target = $region40
        $region39: #{tpu_custom_call.1} parent=11 // pred_region
          %s426 = ssub.s32 64, 64
          %427 = vsyncadd [#allocation15], %s426
          %s429 = sshll.u32 [#allocation14], 4
          %s430 = int_to_ptr.vmem [resolvable:$true] %s429
          %432 = dma.hbm_to_vmem [thread:$0]  %s7, 64, %s430, [#allocation15]
        $region40: #{tpu_custom_call.1} parent=11 // pred_fallthru
          _
        // Predicated region
        $region41: #{tpu_custom_call.1} parent=11 // pred_check
          %p433 = pneg %p225
        $region42: #{tpu_custom_call.1} parent=11 // pred_check_branch
          %435 = sbr.rel (%p433) target = $region44
        $region43: #{tpu_custom_call.1} parent=11 // pred_region
          %s437 = ssub.s32 64, 64
          %438 = vsyncadd [#allocation15], %s437
          %s440 = sshll.u32 [#allocation16], 4
          %s441 = int_to_ptr.vmem [resolvable:$true] %s440
          %443 = dma.hbm_to_vmem [thread:$0]  %s8, 64, %s441, [#allocation15]
        $region44: #{tpu_custom_call.1} parent=11 // pred_fallthru
          _
        // Predicated region
        $region45: #{tpu_custom_call.1} parent=11 // pred_check
          %p444 = pneg %p246
        $region46: #{tpu_custom_call.1} parent=11 // pred_check_branch
          %446 = sbr.rel (%p444) target = $region48
        $region47: #{tpu_custom_call.1} parent=11 // pred_region
          %s448 = ssub.s32 64, 64
          %449 = vsyncadd [#allocation18], %s448
          %s451 = sshll.u32 [#allocation17], 4
          %s452 = int_to_ptr.vmem [resolvable:$true] %s451
          %454 = dma.hbm_to_vmem [thread:$0]  %s9, 64, %s452, [#allocation18]
        $region48: #{tpu_custom_call.1} parent=11 // pred_fallthru
          _
        // Predicated region
        $region49: #{tpu_custom_call.1} parent=11 // pred_check
          %p455 = pneg %p267
        $region50: #{tpu_custom_call.1} parent=11 // pred_check_branch
          %457 = sbr.rel (%p455) target = $region52
        $region51: #{tpu_custom_call.1} parent=11 // pred_region
          %s459 = ssub.s32 8192, 8192
          %460 = vsyncadd [#allocation18], %s459
          %s461 = sshll.u32 [#allocation19], 4
          %s462 = int_to_ptr.vmem [resolvable:$true] %s461
          %467 = dma.hbm_to_vmem [thread:$0]  %s10, 8192, %s462, [#allocation18], 128, 128, 8
        $region52: #{tpu_custom_call.1} parent=11 // pred_fallthru
          _
        // Predicated region
        $region53: #{tpu_custom_call.1} parent=11 // pred_check
          %p468 = pneg %p288
        $region54: #{tpu_custom_call.1} parent=11 // pred_check_branch
          %470 = sbr.rel (%p468) target = $region56
        $region55: #{tpu_custom_call.1} parent=11 // pred_region
          %s472 = ssub.s32 16, 16
          %473 = vsyncadd [#allocation21], %s472
          %s475 = sshll.u32 [#allocation20], 4
          %s476 = int_to_ptr.vmem [resolvable:$true] %s475
          %478 = dma.hbm_to_vmem [thread:$0]  %s11, 16, %s476, [#allocation21]
        $region56: #{tpu_custom_call.1} parent=11 // pred_fallthru
          _
        // Predicated region
        $region57: #{tpu_custom_call.1} parent=11 // pred_check
          %p479 = pneg %p309
        $region58: #{tpu_custom_call.1} parent=11 // pred_check_branch
          %481 = sbr.rel (%p479) target = $region60
        $region59: #{tpu_custom_call.1} parent=11 // pred_region
          %s483 = ssub.s32 16, 16
          %484 = vsyncadd [#allocation21], %s483
          %s486 = sshll.u32 [#allocation22], 4
          %s487 = int_to_ptr.vmem [resolvable:$true] %s486
          %489 = dma.hbm_to_vmem [thread:$0]  %s12, 16, %s487, [#allocation21]
        $region60: #{tpu_custom_call.1} parent=11 // pred_fallthru
          _
      $region12: #{tpu_custom_call.1} parent=5 // pred_fallthru
        _
      %p490 = scmp.lt.s32.totalorder %s31, 2
      // Predicated region
      $region61: #{tpu_custom_call.1} parent=5 // pred_check
        %p491 = pneg %p490
      $region62: #{tpu_custom_call.1} parent=5 // pred_check_branch
        %493 = sbr.rel (%p491) target = $region64
      $region63: #{tpu_custom_call.1} parent=5 // pred_region
        // Predicated region
        $region65: #{tpu_custom_call.1} parent=63 // pred_check
          %p494 = pneg %p51
        $region66: #{tpu_custom_call.1} parent=63 // pred_check_branch
          %496 = sbr.rel (%p494) target = $region68
        $region67: #{tpu_custom_call.1} parent=63 // pred_region
          %s497 = sand.u32 %s41, 1
          %s498 = scalar_lea.sflag [#allocation3], %s497
          %s499 = sand.u32 %s41, 1
          %s500 = smul.addr %s499, 48
          %s501 = scalar_lea.vmem [#allocation2], %s500
          %s503 = ssub.s32 768, 768
          %504 = vsyncadd %s498, %s503
          %s505 = smul.addr %s31, 6
          %s506 = smul.addr %s505, 128
          %s507 = scalar_lea.hbm %s0, %s506
          %s508 = sshll.u32 %s501, 4
          %s509 = int_to_ptr.vmem [resolvable:$true] %s508
          %514 = dma.hbm_to_vmem [thread:$0]  %s507, 768, %s509, %s498, 256, 256, 16
        $region68: #{tpu_custom_call.1} parent=63 // pred_fallthru
          _
      $region64: #{tpu_custom_call.1} parent=5 // pred_fallthru
        _
      %p515 = scmp.le.s32.totalorder 1, %s31
      %p516 = scmp.lt.s32.totalorder %s31, 3
      %p517 = pnand %p515, %p516
      %p518 = pneg %p517
      // Predicated region
      $region69: #{tpu_custom_call.1} parent=5 // pred_check
        _
      $region70: #{tpu_custom_call.1} parent=5 // pred_check_branch
        %520 = sbr.rel (%p517) target = $region72
      $region71: #{tpu_custom_call.1} parent=5 // pred_region
        %s521 = ssub.s32 %s31, 1
        %s522 = sand.u32 %s44, 1
        %s523 = scalar_lea.sflag [#allocation3], %s522
        %s524 = sand.u32 %s44, 1
        %s525 = smul.addr %s524, 48
        %s526 = scalar_lea.vmem [#allocation2], %s525
        // Predicated region
        $region73: #{tpu_custom_call.1} parent=71 // pred_check
          %p527 = pneg %p57
        $region74: #{tpu_custom_call.1} parent=71 // pred_check_branch
          %529 = sbr.rel (%p527) target = $region76
        $region75: #{tpu_custom_call.1} parent=71 // pred_region
          %530 = dma.done %s523, 768
        $region76: #{tpu_custom_call.1} parent=71 // pred_fallthru
          _
        // Predicated region
        $region77: #{tpu_custom_call.1} parent=71 // pred_check
          %p531 = pneg %p78
        $region78: #{tpu_custom_call.1} parent=71 // pred_check_branch
          %533 = sbr.rel (%p531) target = $region80
        $region79: #{tpu_custom_call.1} parent=71 // pred_region
          %534 = dma.done [#allocation6], 11520
        $region80: #{tpu_custom_call.1} parent=71 // pred_fallthru
          _
        // Predicated region
        $region81: #{tpu_custom_call.1} parent=71 // pred_check
          %p535 = pneg %p99
        $region82: #{tpu_custom_call.1} parent=71 // pred_check_branch
          %537 = sbr.rel (%p535) target = $region84
        $region83: #{tpu_custom_call.1} parent=71 // pred_region
          %538 = dma.done [#allocation6], 80
        $region84: #{tpu_custom_call.1} parent=71 // pred_fallthru
          _
        // Predicated region
        $region85: #{tpu_custom_call.1} parent=71 // pred_check
          %p539 = pneg %p120
        $region86: #{tpu_custom_call.1} parent=71 // pred_check_branch
          %541 = sbr.rel (%p539) target = $region88
        $region87: #{tpu_custom_call.1} parent=71 // pred_region
          %542 = dma.done [#allocation9], 80
        $region88: #{tpu_custom_call.1} parent=71 // pred_fallthru
          _
        // Predicated region
        $region89: #{tpu_custom_call.1} parent=71 // pred_check
          %p543 = pneg %p141
        $region90: #{tpu_custom_call.1} parent=71 // pred_check_branch
          %545 = sbr.rel (%p543) target = $region92
        $region91: #{tpu_custom_call.1} parent=71 // pred_region
          %546 = dma.done [#allocation9], 80
        $region92: #{tpu_custom_call.1} parent=71 // pred_fallthru
          _
        // Predicated region
        $region93: #{tpu_custom_call.1} parent=71 // pred_check
          %p547 = pneg %p162
        $region94: #{tpu_custom_call.1} parent=71 // pred_check_branch
          %549 = sbr.rel (%p547) target = $region96
        $region95: #{tpu_custom_call.1} parent=71 // pred_region
          %550 = dma.done [#allocation12], 1920
        $region96: #{tpu_custom_call.1} parent=71 // pred_fallthru
          _
        // Predicated region
        $region97: #{tpu_custom_call.1} parent=71 // pred_check
          %p551 = pneg %p183
        $region98: #{tpu_custom_call.1} parent=71 // pred_check_branch
          %553 = sbr.rel (%p551) target = $region100
        $region99: #{tpu_custom_call.1} parent=71 // pred_region
          %554 = dma.done [#allocation12], 720
        $region100: #{tpu_custom_call.1} parent=71 // pred_fallthru
          _
        // Predicated region
        $region101: #{tpu_custom_call.1} parent=71 // pred_check
          %p555 = pneg %p204
        $region102: #{tpu_custom_call.1} parent=71 // pred_check_branch
          %557 = sbr.rel (%p555) target = $region104
        $region103: #{tpu_custom_call.1} parent=71 // pred_region
          %558 = dma.done [#allocation15], 64
        $region104: #{tpu_custom_call.1} parent=71 // pred_fallthru
          _
        // Predicated region
        $region105: #{tpu_custom_call.1} parent=71 // pred_check
          %p559 = pneg %p225
        $region106: #{tpu_custom_call.1} parent=71 // pred_check_branch
          %561 = sbr.rel (%p559) target = $region108
        $region107: #{tpu_custom_call.1} parent=71 // pred_region
          %562 = dma.done [#allocation15], 64
        $region108: #{tpu_custom_call.1} parent=71 // pred_fallthru
          _
        // Predicated region
        $region109: #{tpu_custom_call.1} parent=71 // pred_check
          %p563 = pneg %p246
        $region110: #{tpu_custom_call.1} parent=71 // pred_check_branch
          %565 = sbr.rel (%p563) target = $region112
        $region111: #{tpu_custom_call.1} parent=71 // pred_region
          %566 = dma.done [#allocation18], 64
        $region112: #{tpu_custom_call.1} parent=71 // pred_fallthru
          _
        // Predicated region
        $region113: #{tpu_custom_call.1} parent=71 // pred_check
          %p567 = pneg %p267
        $region114: #{tpu_custom_call.1} parent=71 // pred_check_branch
          %569 = sbr.rel (%p567) target = $region116
        $region115: #{tpu_custom_call.1} parent=71 // pred_region
          %570 = dma.done [#allocation18], 8192
        $region116: #{tpu_custom_call.1} parent=71 // pred_fallthru
          _
        // Predicated region
        $region117: #{tpu_custom_call.1} parent=71 // pred_check
          %p571 = pneg %p288
        $region118: #{tpu_custom_call.1} parent=71 // pred_check_branch
          %573 = sbr.rel (%p571) target = $region120
        $region119: #{tpu_custom_call.1} parent=71 // pred_region
          %574 = dma.done [#allocation21], 16
        $region120: #{tpu_custom_call.1} parent=71 // pred_fallthru
          _
        // Predicated region
        $region121: #{tpu_custom_call.1} parent=71 // pred_check
          %p575 = pneg %p309
        $region122: #{tpu_custom_call.1} parent=71 // pred_check_branch
          %577 = sbr.rel (%p575) target = $region124
        $region123: #{tpu_custom_call.1} parent=71 // pred_region
          %578 = dma.done [#allocation21], 16
        $region124: #{tpu_custom_call.1} parent=71 // pred_fallthru
          _
        %s579 = sand.u32 %s44, 1
        %s580 = scalar_lea.sflag [#allocation3], %s579
        %s581 = sand.u32 %s44, 1
        %s582 = smul.addr %s581, 48
        %s583 = scalar_lea.vmem [#allocation2], %s582
        %p584 = pneg %p57
        %p585 = pneg %p54
        %p586 = pneg %p78
        %p587 = pneg %p75
        %p588 = pneg %p99
        %p589 = pneg %p96
        %p590 = pneg %p120
        %p591 = pneg %p117
        %p592 = pneg %p141
        %p593 = pneg %p138
        %p594 = pneg %p162
        %p595 = pneg %p159
        %p596 = pneg %p183
        %p597 = pneg %p180
        %p598 = pneg %p204
        %p599 = pneg %p201
        %p600 = pneg %p225
        %p601 = pneg %p222
        %p602 = pneg %p246
        %p603 = pneg %p243
        %p604 = pneg %p267
        %p605 = pneg %p264
        %p606 = pneg %p288
        %p607 = pneg %p285
        %p608 = pneg %p309
        %p609 = pneg %p306
        %p610 = pneg %p335
        %p611 = pneg %p332
        %s612 = sand.u32 %s322, 1
        %s613 = scalar_lea.sflag [#allocation4], %s612
        %s614 = sand.u32 %s322, 1
        %s615 = smul.addr %s614, 16
        %s616 = scalar_lea.vmem [#allocation23], %s615
        %v617 = vld [vmem:[%s526] sm:$0xff]
        %v618 = vld [vmem:[%s526 + $0x8] sm:$0xff]
        %v619 = vld [vmem:[%s526 + $0x10] sm:$0xff]
        %v620 = vld [vmem:[%s526 + $0x18] sm:$0xff]
        %v621 = vld [vmem:[%s526 + $0x20] sm:$0x3]
        %v622 = vld [vmem:[%s526 + $0x28] sm:$0x3]
        %v623 = vld [vmem:[#allocation5] sm:$0xff]
        %v624 = vld [vmem:[#allocation5 + $0x8] sm:$0xff]
        %v625 = vld [vmem:[#allocation5 + $0x10] sm:$0xff]
        %v626 = vld [vmem:[#allocation5 + $0x18] sm:$0xff]
        %v627 = vld [vmem:[#allocation5 + $0x20] sm:$0xff]
        %v628 = vld [vmem:[#allocation5 + $0x28] sm:$0xff]
        %v629 = vld [vmem:[#allocation5 + $0x30] sm:$0xff]
        %v630 = vld [vmem:[#allocation5 + $0x38] sm:$0xff]
        %v631 = vld [vmem:[#allocation5 + $0x40] sm:$0xff]
        %v632 = vld [vmem:[#allocation5 + $0x48] sm:$0xff]
        %v633 = vld [vmem:[#allocation5 + $0x50] sm:$0xff]
        %v634 = vld [vmem:[#allocation5 + $0x58] sm:$0xff]
        %v635 = vld [vmem:[#allocation5 + $0x60] sm:$0xff]
        %v636 = vld [vmem:[#allocation5 + $0x68] sm:$0xff]
        %v637 = vld [vmem:[#allocation5 + $0x70] sm:$0xff]
        %v638 = vld [vmem:[#allocation5 + $0x78] sm:$0xff]
        %v639 = vld [vmem:[#allocation5 + $0x80] sm:$0xff]
        %v640 = vld [vmem:[#allocation5 + $0x88] sm:$0xff]
        %v641 = vld [vmem:[#allocation5 + $0x90] sm:$0xff]
        %v642 = vld [vmem:[#allocation5 + $0x98] sm:$0xff]
        %v643 = vld [vmem:[#allocation5 + $0xa0] sm:$0xff]
        %v644 = vld [vmem:[#allocation5 + $0xa8] sm:$0xff]
        %v645 = vld [vmem:[#allocation5 + $0xb0] sm:$0xff]
        %v646 = vld [vmem:[#allocation5 + $0xb8] sm:$0xff]
        %v647 = vld [vmem:[#allocation5 + $0xc0] sm:$0xff]
        %v648 = vld [vmem:[#allocation5 + $0xc8] sm:$0xff]
        %v649 = vld [vmem:[#allocation5 + $0xd0] sm:$0xff]
        %v650 = vld [vmem:[#allocation5 + $0xd8] sm:$0xff]
        %v651 = vld [vmem:[#allocation5 + $0xe0] sm:$0xff]
        %v652 = vld [vmem:[#allocation5 + $0xe8] sm:$0xff]
        %v653 = vld [vmem:[#allocation5 + $0xf0] sm:$0xff]
        %v654 = vld [vmem:[#allocation5 + $0xf8] sm:$0xff]
        %v655 = vld [vmem:[#allocation5 + $0x100] sm:$0xff]
        %v656 = vld [vmem:[#allocation5 + $0x108] sm:$0xff]
        %v657 = vld [vmem:[#allocation5 + $0x110] sm:$0xff]
        %v658 = vld [vmem:[#allocation5 + $0x118] sm:$0xff]
        %v659 = vld [vmem:[#allocation5 + $0x120] sm:$0xff]
        %v660 = vld [vmem:[#allocation5 + $0x128] sm:$0xff]
        %v661 = vld [vmem:[#allocation5 + $0x130] sm:$0xff]
        %v662 = vld [vmem:[#allocation5 + $0x138] sm:$0xff]
        %v663 = vld [vmem:[#allocation5 + $0x140] sm:$0xff]
        %v664 = vld [vmem:[#allocation5 + $0x148] sm:$0xff]
        %v665 = vld [vmem:[#allocation5 + $0x150] sm:$0xff]
        %v666 = vld [vmem:[#allocation5 + $0x158] sm:$0xff]
        %v667 = vld [vmem:[#allocation5 + $0x160] sm:$0xff]
        %v668 = vld [vmem:[#allocation5 + $0x168] sm:$0xff]
        %v669 = vld [vmem:[#allocation5 + $0x170] sm:$0xff]
        %v670 = vld [vmem:[#allocation5 + $0x178] sm:$0xff]
        %v671 = vld [vmem:[#allocation5 + $0x180] sm:$0xff]
        %v672 = vld [vmem:[#allocation5 + $0x188] sm:$0xff]
        %v673 = vld [vmem:[#allocation5 + $0x190] sm:$0xff]
        %v674 = vld [vmem:[#allocation5 + $0x198] sm:$0xff]
        %v675 = vld [vmem:[#allocation5 + $0x1a0] sm:$0xff]
        %v676 = vld [vmem:[#allocation5 + $0x1a8] sm:$0xff]
        %v677 = vld [vmem:[#allocation5 + $0x1b0] sm:$0xff]
        %v678 = vld [vmem:[#allocation5 + $0x1b8] sm:$0xff]
        %v679 = vld [vmem:[#allocation5 + $0x1c0] sm:$0xff]
        %v680 = vld [vmem:[#allocation5 + $0x1c8] sm:$0xff]
        %v681 = vld [vmem:[#allocation5 + $0x1d0] sm:$0xff]
        %v682 = vld [vmem:[#allocation5 + $0x1d8] sm:$0xff]
        %v683 = vld [vmem:[#allocation5 + $0x1e0] sm:$0xff]
        %v684 = vld [vmem:[#allocation5 + $0x1e8] sm:$0xff]
        %v685 = vld [vmem:[#allocation5 + $0x1f0] sm:$0xff]
        %v686 = vld [vmem:[#allocation5 + $0x1f8] sm:$0xff]
        %v687 = vld [vmem:[#allocation5 + $0x200] sm:$0xff]
        %v688 = vld [vmem:[#allocation5 + $0x208] sm:$0xff]
        %v689 = vld [vmem:[#allocation5 + $0x210] sm:$0xff]
        %v690 = vld [vmem:[#allocation5 + $0x218] sm:$0xff]
        %v691 = vld [vmem:[#allocation5 + $0x220] sm:$0xff]
        %v692 = vld [vmem:[#allocation5 + $0x228] sm:$0xff]
        %v693 = vld [vmem:[#allocation5 + $0x230] sm:$0xff]
        %v694 = vld [vmem:[#allocation5 + $0x238] sm:$0xff]
        %v695 = vld [vmem:[#allocation5 + $0x240] sm:$0xff]
        %v696 = vld [vmem:[#allocation5 + $0x248] sm:$0xff]
        %v697 = vld [vmem:[#allocation5 + $0x250] sm:$0xff]
        %v698 = vld [vmem:[#allocation5 + $0x258] sm:$0xff]
        %v699 = vld [vmem:[#allocation5 + $0x260] sm:$0xff]
        %v700 = vld [vmem:[#allocation5 + $0x268] sm:$0xff]
        %v701 = vld [vmem:[#allocation5 + $0x270] sm:$0xff]
        %v702 = vld [vmem:[#allocation5 + $0x278] sm:$0xff]
        %v703 = vld [vmem:[#allocation5 + $0x280] sm:$0xff]
        %v704 = vld [vmem:[#allocation5 + $0x288] sm:$0xff]
        %v705 = vld [vmem:[#allocation5 + $0x290] sm:$0xff]
        %v706 = vld [vmem:[#allocation5 + $0x298] sm:$0xff]
        %v707 = vld [vmem:[#allocation5 + $0x2a0] sm:$0xff]
        %v708 = vld [vmem:[#allocation5 + $0x2a8] sm:$0xff]
        %v709 = vld [vmem:[#allocation5 + $0x2b0] sm:$0xff]
        %v710 = vld [vmem:[#allocation5 + $0x2b8] sm:$0xff]
        %v711 = vld [vmem:[#allocation5 + $0x2c0] sm:$0xff]
        %v712 = vld [vmem:[#allocation5 + $0x2c8] sm:$0xff]
        %vm713 = vcmask 130048
        %v715 = vsel %vm713, %v618, 0
        %v718 = vsel %vm713, %v620, 0
        %v721 = vsel %vm713, %v622, 0
        %723 = vmatprep.subr.mxu0 %v624
        %724 = vmatpush1.msra.mxu0 %v623
        %725 = vmatprep.subr.mxu0 %v629
        %726 = vmatpush1.msra.mxu0 %v628
        %727 = vmatprep.subr.mxu0 %v634
        %728 = vmatpush1.msra.mxu0 %v633
        %729 = vmatprep.subr.mxu0 %v639
        %730 = vmatpush1.msra.mxu0 %v638
        %731 = vmatprep.subr.mxu0 %v644
        %732 = vmatpush1.msra.mxu0 %v643
        %733 = vmatprep.subr.mxu0 %v649
        %734 = vmatpush1.msra.mxu0 %v648
        %735 = vmatprep.subr.mxu0 %v654
        %736 = vmatpush1.msra.mxu0 %v653
        %737 = vmatprep.subr.mxu0 %v659
        %738 = vmatpush1.msra.mxu0 %v658
        %739 = vmatprep.subr.mxu0 %v664
        %740 = vmatpush1.msra.mxu0 %v663
        %741 = vmatprep.subr.mxu0 %v669
        %742 = vmatpush1.msra.mxu0 %v668
        %743 = vmatprep.subr.mxu0 %v674
        %744 = vmatpush1.msra.mxu0 %v673
        %745 = vmatprep.subr.mxu0 %v679
        %746 = vmatpush1.msra.mxu0 %v678
        %747 = vmatprep.subr.mxu0 %v684
        %748 = vmatpush1.msra.mxu0 %v683
        %749 = vmatprep.subr.mxu0 %v689
        %750 = vmatpush1.msra.mxu0 %v688
        %751 = vmatprep.subr.mxu0 %v694
        %752 = vmatpush1.msra.mxu0 %v693
        %753 = vmatprep.subr.mxu0 %v699
        %754 = vmatpush1.msra.mxu0 %v698
        %755 = vmatprep.subr.mxu0 %v704
        %756 = vmatpush1.msra.mxu0 %v703
        %757 = vmatprep.subr.mxu0 %v709
        %758 = vmatpush1.msra.mxu0 %v708
        %759 = vmatprep.subr.mxu0 0.0
        %760 = vmatpush1.msra.mxu0 0.0
        %761 = vmatprep.subr.mxu0 0.0
        %762 = vmatpush1.msra.mxu0 0.0
        %763 = vmatprep.subr.mxu0 0.0
        %764 = vmatpush1.msra.mxu0 0.0
        %765 = vmatprep.subr.mxu0 0.0
        %766 = vmatpush1.msra.mxu0 0.0
        %767 = vmatprep.subr.mxu0 0.0
        %768 = vmatpush1.msra.mxu0 0.0
        %769 = vmatprep.subr.mxu0 0.0
        %770 = vmatpush1.msra.mxu0 0.0
        %771 = vmatprep.subr.mxu0 0.0
        %772 = vmatpush1.msra.mxu0 0.0
        %773 = vmatprep.subr.mxu0 0.0
        %774 = vmatpush1.msra.mxu0 0.0
        %775 = vmatprep.subr.mxu0 0.0
        %776 = vmatpush1.msra.mxu0 0.0
        %777 = vmatprep.subr.mxu0 0.0
        %778 = vmatpush1.msra.mxu0 0.0
        %779 = vmatprep.subr.mxu0 0.0
        %780 = vmatpush1.msra.mxu0 0.0
        %781 = vmatprep.subr.mxu0 0.0
        %782 = vmatpush1.msra.mxu0 0.0
        %783 = vmatprep.subr.mxu0 0.0
        %784 = vmatpush1.msra.mxu0 0.0
        %785 = vmatprep.subr.mxu0 0.0
        %786 = vmatpush1.msra.mxu0 0.0
        %787 = vmatprep.mubr.f32.mxu0 %v715
        %788 = vmatmul.mubr.f32.gmra.mrb[0].mxu0 %v617
        %v789 = vpop.f32.mrb[0].mxu0
        %v790 = vadd.f32 0.0, %v789
        %v791 = vpop.f32.mrb[0].mxu0
        %v792 = vadd.f32 0.0, %v791
        %793 = vmatprep.mubr.f32.mxu0 %v718
        %794 = vmatmul.mubr.f32.gmra.mrb[0].mxu0 %v619
        %v795 = vpop.f32.mrb[0].mxu0
        %v796 = vadd.f32 0.0, %v795
        %v797 = vpop.f32.mrb[0].mxu0
        %v798 = vadd.f32 0.0, %v797
        %799 = vmatprep.mubr.f32.mxu0 %v721
        %800 = vmatmul.mubr.f32.gmra.mrb[0].mxu0 %v621
        %v801 = vpop.f32.mrb[0].mxu0
        %v802 = vadd.f32 0.0, %v801
        %v803 = vpop.f32.mrb[0].mxu0
        %v804 = vadd.f32 0.0, %v803
        %805 = vdwg.mxu0
        %806 = vmatprep.subr.mxu0 %v626
        %807 = vmatpush1.msra.mxu0 %v625
        %808 = vmatprep.subr.mxu0 %v631
        %809 = vmatpush1.msra.mxu0 %v630
        %810 = vmatprep.subr.mxu0 %v636
        %811 = vmatpush1.msra.mxu0 %v635
        %812 = vmatprep.subr.mxu0 %v641
        %813 = vmatpush1.msra.mxu0 %v640
        %814 = vmatprep.subr.mxu0 %v646
        %815 = vmatpush1.msra.mxu0 %v645
        %816 = vmatprep.subr.mxu0 %v651
        %817 = vmatpush1.msra.mxu0 %v650
        %818 = vmatprep.subr.mxu0 %v656
        %819 = vmatpush1.msra.mxu0 %v655
        %820 = vmatprep.subr.mxu0 %v661
        %821 = vmatpush1.msra.mxu0 %v660
        %822 = vmatprep.subr.mxu0 %v666
        %823 = vmatpush1.msra.mxu0 %v665
        %824 = vmatprep.subr.mxu0 %v671
        %825 = vmatpush1.msra.mxu0 %v670
        %826 = vmatprep.subr.mxu0 %v676
        %827 = vmatpush1.msra.mxu0 %v675
        %828 = vmatprep.subr.mxu0 %v681
        %829 = vmatpush1.msra.mxu0 %v680
        %830 = vmatprep.subr.mxu0 %v686
        %831 = vmatpush1.msra.mxu0 %v685
        %832 = vmatprep.subr.mxu0 %v691
        %833 = vmatpush1.msra.mxu0 %v690
        %834 = vmatprep.subr.mxu0 %v696
        %835 = vmatpush1.msra.mxu0 %v695
        %836 = vmatprep.subr.mxu0 %v701
        %837 = vmatpush1.msra.mxu0 %v700
        %838 = vmatprep.subr.mxu0 %v706
        %839 = vmatpush1.msra.mxu0 %v705
        %840 = vmatprep.subr.mxu0 %v711
        %841 = vmatpush1.msra.mxu0 %v710
        %842 = vmatprep.subr.mxu0 0.0
        %843 = vmatpush1.msra.mxu0 0.0
        %844 = vmatprep.subr.mxu0 0.0
        %845 = vmatpush1.msra.mxu0 0.0
        %846 = vmatprep.subr.mxu0 0.0
        %847 = vmatpush1.msra.mxu0 0.0
        %848 = vmatprep.subr.mxu0 0.0
        %849 = vmatpush1.msra.mxu0 0.0
        %850 = vmatprep.subr.mxu0 0.0
        %851 = vmatpush1.msra.mxu0 0.0
        %852 = vmatprep.subr.mxu0 0.0
        %853 = vmatpush1.msra.mxu0 0.0
        %854 = vmatprep.subr.mxu0 0.0
        %855 = vmatpush1.msra.mxu0 0.0
        %856 = vmatprep.subr.mxu0 0.0
        %857 = vmatpush1.msra.mxu0 0.0
        %858 = vmatprep.subr.mxu0 0.0
        %859 = vmatpush1.msra.mxu0 0.0
        %860 = vmatprep.subr.mxu0 0.0
        %861 = vmatpush1.msra.mxu0 0.0
        %862 = vmatprep.subr.mxu0 0.0
        %863 = vmatpush1.msra.mxu0 0.0
        %864 = vmatprep.subr.mxu0 0.0
        %865 = vmatpush1.msra.mxu0 0.0
        %866 = vmatprep.subr.mxu0 0.0
        %867 = vmatpush1.msra.mxu0 0.0
        %868 = vmatprep.subr.mxu0 0.0
        %869 = vmatpush1.msra.mxu0 0.0
        %870 = vmatprep.mubr.f32.mxu0 %v715
        %871 = vmatmul.mubr.f32.gmra.mrb[0].mxu0 %v617
        %v872 = vpop.f32.mrb[0].mxu0
        %v873 = vadd.f32 0.0, %v872
        %v874 = vpop.f32.mrb[0].mxu0
        %v875 = vadd.f32 0.0, %v874
        %876 = vmatprep.mubr.f32.mxu0 %v718
        %877 = vmatmul.mubr.f32.gmra.mrb[0].mxu0 %v619
        %v878 = vpop.f32.mrb[0].mxu0
        %v879 = vadd.f32 0.0, %v878
        %v880 = vpop.f32.mrb[0].mxu0
        %v881 = vadd.f32 0.0, %v880
        %882 = vmatprep.mubr.f32.mxu0 %v721
        %883 = vmatmul.mubr.f32.gmra.mrb[0].mxu0 %v621
        %v884 = vpop.f32.mrb[0].mxu0
        %v885 = vadd.f32 0.0, %v884
        %v886 = vpop.f32.mrb[0].mxu0
        %v887 = vadd.f32 0.0, %v886
        %888 = vdwg.mxu0
        %889 = vmatprep.subr.mxu0 0.0
        %890 = vmatpush1.msra.mxu0 %v627
        %891 = vmatprep.subr.mxu0 0.0
        %892 = vmatpush1.msra.mxu0 %v632
        %893 = vmatprep.subr.mxu0 0.0
        %894 = vmatpush1.msra.mxu0 %v637
        %895 = vmatprep.subr.mxu0 0.0
        %896 = vmatpush1.msra.mxu0 %v642
        %897 = vmatprep.subr.mxu0 0.0
        %898 = vmatpush1.msra.mxu0 %v647
        %899 = vmatprep.subr.mxu0 0.0
        %900 = vmatpush1.msra.mxu0 %v652
        %901 = vmatprep.subr.mxu0 0.0
        %902 = vmatpush1.msra.mxu0 %v657
        %903 = vmatprep.subr.mxu0 0.0
        %904 = vmatpush1.msra.mxu0 %v662
        %905 = vmatprep.subr.mxu0 0.0
        %906 = vmatpush1.msra.mxu0 %v667
        %907 = vmatprep.subr.mxu0 0.0
        %908 = vmatpush1.msra.mxu0 %v672
        %909 = vmatprep.subr.mxu0 0.0
        %910 = vmatpush1.msra.mxu0 %v677
        %911 = vmatprep.subr.mxu0 0.0
        %912 = vmatpush1.msra.mxu0 %v682
        %913 = vmatprep.subr.mxu0 0.0
        %914 = vmatpush1.msra.mxu0 %v687
        %915 = vmatprep.subr.mxu0 0.0
        %916 = vmatpush1.msra.mxu0 %v692
        %917 = vmatprep.subr.mxu0 0.0
        %918 = vmatpush1.msra.mxu0 %v697
        %919 = vmatprep.subr.mxu0 0.0
        %920 = vmatpush1.msra.mxu0 %v702
        %921 = vmatprep.subr.mxu0 0.0
        %922 = vmatpush1.msra.mxu0 %v707
        %923 = vmatprep.subr.mxu0 0.0
        %924 = vmatpush1.msra.mxu0 %v712
        %925 = vmatprep.subr.mxu0 0.0
        %926 = vmatpush1.msra.mxu0 0.0
        %927 = vmatprep.subr.mxu0 0.0
        %928 = vmatpush1.msra.mxu0 0.0
        %929 = vmatprep.subr.mxu0 0.0
        %930 = vmatpush1.msra.mxu0 0.0
        %931 = vmatprep.subr.mxu0 0.0
        %932 = vmatpush1.msra.mxu0 0.0
        %933 = vmatprep.subr.mxu0 0.0
        %934 = vmatpush1.msra.mxu0 0.0
        %935 = vmatprep.subr.mxu0 0.0
        %936 = vmatpush1.msra.mxu0 0.0
        %937 = vmatprep.subr.mxu0 0.0
        %938 = vmatpush1.msra.mxu0 0.0
        %939 = vmatprep.subr.mxu0 0.0
        %940 = vmatpush1.msra.mxu0 0.0
        %941 = vmatprep.subr.mxu0 0.0
        %942 = vmatpush1.msra.mxu0 0.0
        %943 = vmatprep.subr.mxu0 0.0
        %944 = vmatpush1.msra.mxu0 0.0
        %945 = vmatprep.subr.mxu0 0.0
        %946 = vmatpush1.msra.mxu0 0.0
        %947 = vmatprep.subr.mxu0 0.0
        %948 = vmatpush1.msra.mxu0 0.0
        %949 = vmatprep.subr.mxu0 0.0
        %950 = vmatpush1.msra.mxu0 0.0
        %951 = vmatprep.subr.mxu0 0.0
        %952 = vmatpush1.msra.mxu0 0.0
        %953 = vmatprep.mubr.f32.mxu0 %v715
        %954 = vmatmul.mubr.f32.gmra.mrb[0].mxu0 %v617
        %v955 = vpop.f32.mrb[0].mxu0
        %v956 = vadd.f32 0.0, %v955
        %v957 = vpop.f32.mrb[0].mxu0
        %958 = vmatprep.mubr.f32.mxu0 %v718
        %959 = vmatmul.mubr.f32.gmra.mrb[0].mxu0 %v619
        %v960 = vpop.f32.mrb[0].mxu0
        %v961 = vadd.f32 0.0, %v960
        %v962 = vpop.f32.mrb[0].mxu0
        %963 = vmatprep.mubr.f32.mxu0 %v721
        %964 = vmatmul.mubr.f32.gmra.mrb[0].mxu0 %v621
        %v965 = vpop.f32.mrb[0].mxu0
        %v966 = vadd.f32 0.0, %v965
        %v967 = vpop.f32.mrb[0].mxu0
        %968 = vdwg.mxu0
        %v969 = vld [vmem:[#allocation7] sm:$0x1f]
        %v971 = vlaneseq
        %v972 = vshrl.u32 %v971, 7
        %v973 = vsub.s32 0, %v972
        %v974 = vrot.slane %v969, %v973
        %v975 = vlaneseq
        %v976 = vshrl.u32 %v975, 7
        %v977 = vsub.s32 1, %v976
        %v978 = vrot.slane %v969, %v977
        %v979 = vlaneseq
        %v980 = vshrl.u32 %v979, 7
        %v981 = vsub.s32 2, %v980
        %v982 = vrot.slane %v969, %v981
        %v983 = vlaneseq
        %v984 = vshrl.u32 %v983, 7
        %v985 = vsub.s32 3, %v984
        %v986 = vrot.slane %v969, %v985
        %v987 = vlaneseq
        %v988 = vshrl.u32 %v987, 7
        %v989 = vsub.s32 4, %v988
        %v990 = vrot.slane %v969, %v989
        %v996 = vmul.f32 %v790, %v974
        %v997 = vmul.f32 %v792, %v978
        %v998 = vmul.f32 %v873, %v982
        %v999 = vmul.f32 %v875, %v986
        %v1000 = vmul.f32 %v956, %v990
        %v1001 = vmul.f32 %v796, %v974
        %v1002 = vmul.f32 %v798, %v978
        %v1003 = vmul.f32 %v879, %v982
        %v1004 = vmul.f32 %v881, %v986
        %v1005 = vmul.f32 %v961, %v990
        %v1006 = vmul.f32 %v802, %v974
        %v1007 = vmul.f32 %v804, %v978
        %v1008 = vmul.f32 %v885, %v982
        %v1009 = vmul.f32 %v887, %v986
        %v1010 = vmul.f32 %v966, %v990
        %v1011 = vld [vmem:[#allocation8] sm:$0x1f]
        %v1013 = vlaneseq
        %v1014 = vshrl.u32 %v1013, 7
        %v1015 = vsub.s32 0, %v1014
        %v1016 = vrot.slane %v1011, %v1015
        %v1017 = vlaneseq
        %v1018 = vshrl.u32 %v1017, 7
        %v1019 = vsub.s32 1, %v1018
        %v1020 = vrot.slane %v1011, %v1019
        %v1021 = vlaneseq
        %v1022 = vshrl.u32 %v1021, 7
        %v1023 = vsub.s32 2, %v1022
        %v1024 = vrot.slane %v1011, %v1023
        %v1025 = vlaneseq
        %v1026 = vshrl.u32 %v1025, 7
        %v1027 = vsub.s32 3, %v1026
        %v1028 = vrot.slane %v1011, %v1027
        %v1029 = vlaneseq
        %v1030 = vshrl.u32 %v1029, 7
        %v1031 = vsub.s32 4, %v1030
        %v1032 = vrot.slane %v1011, %v1031
        %v1038 = vadd.f32 %v996, %v1016
        %v1039 = vadd.f32 %v997, %v1020
        %v1040 = vadd.f32 %v998, %v1024
        %v1041 = vadd.f32 %v999, %v1028
        %v1042 = vadd.f32 %v1000, %v1032
        %v1043 = vadd.f32 %v1001, %v1016
        %v1044 = vadd.f32 %v1002, %v1020
        %v1045 = vadd.f32 %v1003, %v1024
        %v1046 = vadd.f32 %v1004, %v1028
        %v1047 = vadd.f32 %v1005, %v1032
        %v1048 = vadd.f32 %v1006, %v1016
        %v1049 = vadd.f32 %v1007, %v1020
        %v1050 = vadd.f32 %v1008, %v1024
        %v1051 = vadd.f32 %v1009, %v1028
        %v1052 = vadd.f32 %v1010, %v1032
        %vm1053 = vcmp.gt.f32.partialorder %v1038, 0.0
        %vm1054 = vcmp.gt.f32.partialorder %v1039, 0.0
        %vm1055 = vcmp.gt.f32.partialorder %v1040, 0.0
        %vm1056 = vcmp.gt.f32.partialorder %v1041, 0.0
        %vm1057 = vcmp.gt.f32.partialorder %v1042, 0.0
        %vm1058 = vcmp.gt.f32.partialorder %v1043, 0.0
        %vm1059 = vcmp.gt.f32.partialorder %v1044, 0.0
        %vm1060 = vcmp.gt.f32.partialorder %v1045, 0.0
        %vm1061 = vcmp.gt.f32.partialorder %v1046, 0.0
        %vm1062 = vcmp.gt.f32.partialorder %v1047, 0.0
        %vm1063 = vcmp.gt.f32.partialorder %v1048, 0.0
        %vm1064 = vcmp.gt.f32.partialorder %v1049, 0.0
        %vm1065 = vcmp.gt.f32.partialorder %v1050, 0.0
        %vm1066 = vcmp.gt.f32.partialorder %v1051, 0.0
        %vm1067 = vcmp.gt.f32.partialorder %v1052, 0.0
        %v1068 = vld [vmem:[#allocation10] sm:$0x1f]
        %v1070 = vlaneseq
        %v1071 = vshrl.u32 %v1070, 7
        %v1072 = vsub.s32 0, %v1071
        %v1073 = vrot.slane %v1068, %v1072
        %v1074 = vlaneseq
        %v1075 = vshrl.u32 %v1074, 7
        %v1076 = vsub.s32 1, %v1075
        %v1077 = vrot.slane %v1068, %v1076
        %v1078 = vlaneseq
        %v1079 = vshrl.u32 %v1078, 7
        %v1080 = vsub.s32 2, %v1079
        %v1081 = vrot.slane %v1068, %v1080
        %v1082 = vlaneseq
        %v1083 = vshrl.u32 %v1082, 7
        %v1084 = vsub.s32 3, %v1083
        %v1085 = vrot.slane %v1068, %v1084
        %v1086 = vlaneseq
        %v1087 = vshrl.u32 %v1086, 7
        %v1088 = vsub.s32 4, %v1087
        %v1089 = vrot.slane %v1068, %v1088
        %v1095 = vmul.f32 %v1073, %v1038
        %v1096 = vmul.f32 %v1077, %v1039
        %v1097 = vmul.f32 %v1081, %v1040
        %v1098 = vmul.f32 %v1085, %v1041
        %v1099 = vmul.f32 %v1089, %v1042
        %v1100 = vmul.f32 %v1073, %v1043
        %v1101 = vmul.f32 %v1077, %v1044
        %v1102 = vmul.f32 %v1081, %v1045
        %v1103 = vmul.f32 %v1085, %v1046
        %v1104 = vmul.f32 %v1089, %v1047
        %v1105 = vmul.f32 %v1073, %v1048
        %v1106 = vmul.f32 %v1077, %v1049
        %v1107 = vmul.f32 %v1081, %v1050
        %v1108 = vmul.f32 %v1085, %v1051
        %v1109 = vmul.f32 %v1089, %v1052
        %v1110 = vsel %vm1053, %v1038, %v1095
        %v1111 = vsel %vm1054, %v1039, %v1096
        %v1112 = vsel %vm1055, %v1040, %v1097
        %v1113 = vsel %vm1056, %v1041, %v1098
        %v1114 = vsel %vm1057, %v1042, %v1099
        %v1115 = vsel %vm1058, %v1043, %v1100
        %v1116 = vsel %vm1059, %v1044, %v1101
        %v1117 = vsel %vm1060, %v1045, %v1102
        %v1118 = vsel %vm1061, %v1046, %v1103
        %v1119 = vsel %vm1062, %v1047, %v1104
        %v1120 = vsel %vm1063, %v1048, %v1105
        %v1121 = vsel %vm1064, %v1049, %v1106
        %v1122 = vsel %vm1065, %v1050, %v1107
        %v1123 = vsel %vm1066, %v1051, %v1108
        %v1124 = vsel %vm1067, %v1052, %v1109
        %v1125 = vld [vmem:[#allocation11] sm:$0xff]
        %v1126 = vld [vmem:[#allocation11 + $0x8] sm:$0xff]
        %v1127 = vld [vmem:[#allocation11 + $0x10] sm:$0xff]
        %v1128 = vld [vmem:[#allocation11 + $0x18] sm:$0xff]
        %v1129 = vld [vmem:[#allocation11 + $0x20] sm:$0xff]
        %v1130 = vld [vmem:[#allocation11 + $0x28] sm:$0xff]
        %v1131 = vld [vmem:[#allocation11 + $0x30] sm:$0xff]
        %v1132 = vld [vmem:[#allocation11 + $0x38] sm:$0xff]
        %v1133 = vld [vmem:[#allocation11 + $0x40] sm:$0xff]
        %v1134 = vld [vmem:[#allocation11 + $0x48] sm:$0xff]
        %v1135 = vld [vmem:[#allocation11 + $0x50] sm:$0x3]
        %v1136 = vld [vmem:[#allocation11 + $0x58] sm:$0x3]
        %v1137 = vld [vmem:[#allocation11 + $0x60] sm:$0x3]
        %v1138 = vld [vmem:[#allocation11 + $0x68] sm:$0x3]
        %v1139 = vld [vmem:[#allocation11 + $0x70] sm:$0x3]
        %v1140 = vmul.f32 %v1110, %v1125
        %v1141 = vmul.f32 %v1111, %v1126
        %v1142 = vmul.f32 %v1112, %v1127
        %v1143 = vmul.f32 %v1113, %v1128
        %v1144 = vmul.f32 %v1114, %v1129
        %v1145 = vmul.f32 %v1115, %v1130
        %v1146 = vmul.f32 %v1116, %v1131
        %v1147 = vmul.f32 %v1117, %v1132
        %v1148 = vmul.f32 %v1118, %v1133
        %v1149 = vmul.f32 %v1119, %v1134
        %v1150 = vmul.f32 %v1120, %v1135
        %v1151 = vmul.f32 %v1121, %v1136
        %v1152 = vmul.f32 %v1122, %v1137
        %v1153 = vmul.f32 %v1123, %v1138
        %v1154 = vmul.f32 %v1124, %v1139
        %v1155 = vld [vmem:[#allocation13] sm:$0x1f]
        %v1157 = vlaneseq
        %v1158 = vshrl.u32 %v1157, 7
        %v1159 = vsub.s32 0, %v1158
        %v1160 = vrot.slane %v1155, %v1159
        %v1161 = vlaneseq
        %v1162 = vshrl.u32 %v1161, 7
        %v1163 = vsub.s32 1, %v1162
        %v1164 = vrot.slane %v1155, %v1163
        %v1165 = vlaneseq
        %v1166 = vshrl.u32 %v1165, 7
        %v1167 = vsub.s32 2, %v1166
        %v1168 = vrot.slane %v1155, %v1167
        %v1169 = vlaneseq
        %v1170 = vshrl.u32 %v1169, 7
        %v1171 = vsub.s32 3, %v1170
        %v1172 = vrot.slane %v1155, %v1171
        %v1177 = vmul.f32 %v1140, %v1160
        %v1178 = vmul.f32 %v1141, %v1164
        %v1179 = vmul.f32 %v1142, %v1168
        %v1180 = vmul.f32 %v1143, %v1172
        %v1181 = vmul.f32 %v1145, %v1160
        %v1182 = vmul.f32 %v1146, %v1164
        %v1183 = vmul.f32 %v1147, %v1168
        %v1184 = vmul.f32 %v1148, %v1172
        %s1185 = scalar_lea.vmem [#allocation13], 15
        %v1186 = vld [vmem:[%s1185] sm:$0x1f]
        %v1188 = vlaneseq
        %v1189 = vshrl.u32 %v1188, 7
        %v1190 = vsub.s32 0, %v1189
        %v1191 = vrot.slane %v1186, %v1190
        %v1192 = vlaneseq
        %v1193 = vshrl.u32 %v1192, 7
        %v1194 = vsub.s32 1, %v1193
        %v1195 = vrot.slane %v1186, %v1194
        %v1196 = vlaneseq
        %v1197 = vshrl.u32 %v1196, 7
        %v1198 = vsub.s32 2, %v1197
        %v1199 = vrot.slane %v1186, %v1198
        %v1200 = vlaneseq
        %v1201 = vshrl.u32 %v1200, 7
        %v1202 = vsub.s32 3, %v1201
        %v1203 = vrot.slane %v1186, %v1202
        %v1208 = vmul.f32 %v1140, %v1191
        %v1209 = vmul.f32 %v1141, %v1195
        %v1210 = vmul.f32 %v1142, %v1199
        %v1211 = vmul.f32 %v1143, %v1203
        %v1212 = vmul.f32 %v1145, %v1191
        %v1213 = vmul.f32 %v1146, %v1195
        %v1214 = vmul.f32 %v1147, %v1199
        %v1215 = vmul.f32 %v1148, %v1203
        %v1216 = vmul.f32 %v1150, %v1191
        %v1217 = vmul.f32 %v1151, %v1195
        %v1218 = vmul.f32 %v1152, %v1199
        %v1219 = vmul.f32 %v1153, %v1203
        %vm1232 = vcmask 1046528
        %v1233 = vrot.slane %v1208, 1
        %v1234 = vrot.slane %v1212, 1
        %v1235 = vsel %vm1232, %v1233, %v1234
        %v1236 = vrot.slane %v1209, 1
        %v1237 = vrot.slane %v1213, 1
        %v1238 = vsel %vm1232, %v1236, %v1237
        %v1239 = vrot.slane %v1210, 1
        %v1240 = vrot.slane %v1214, 1
        %v1241 = vsel %vm1232, %v1239, %v1240
        %v1242 = vrot.slane %v1211, 1
        %v1243 = vrot.slane %v1215, 1
        %v1244 = vsel %vm1232, %v1242, %v1243
        %v1245 = vrot.slane %v1216, 1
        %v1246 = vsel %vm1232, %v1234, %v1245
        %v1247 = vrot.slane %v1217, 1
        %v1248 = vsel %vm1232, %v1237, %v1247
        %v1249 = vrot.slane %v1218, 1
        %v1250 = vsel %vm1232, %v1240, %v1249
        %v1251 = vrot.slane %v1219, 1
        %v1252 = vsel %vm1232, %v1243, %v1251
        %v1261 = vadd.f32 %v1177, %v1235
        %v1262 = vadd.f32 %v1178, %v1238
        %v1263 = vadd.f32 %v1179, %v1241
        %v1264 = vadd.f32 %v1180, %v1244
        %v1265 = vadd.f32 %v1181, %v1246
        %v1266 = vadd.f32 %v1182, %v1248
        %v1267 = vadd.f32 %v1183, %v1250
        %v1268 = vadd.f32 %v1184, %v1252
        %s1269 = scalar_lea.vmem [#allocation13], 30
        %v1270 = vld [vmem:[%s1269] sm:$0x1f]
        %v1272 = vlaneseq
        %v1273 = vshrl.u32 %v1272, 7
        %v1274 = vsub.s32 0, %v1273
        %v1275 = vrot.slane %v1270, %v1274
        %v1276 = vlaneseq
        %v1277 = vshrl.u32 %v1276, 7
        %v1278 = vsub.s32 1, %v1277
        %v1279 = vrot.slane %v1270, %v1278
        %v1280 = vlaneseq
        %v1281 = vshrl.u32 %v1280, 7
        %v1282 = vsub.s32 2, %v1281
        %v1283 = vrot.slane %v1270, %v1282
        %v1284 = vlaneseq
        %v1285 = vshrl.u32 %v1284, 7
        %v1286 = vsub.s32 3, %v1285
        %v1287 = vrot.slane %v1270, %v1286
        %v1292 = vmul.f32 %v1140, %v1275
        %v1293 = vmul.f32 %v1141, %v1279
        %v1294 = vmul.f32 %v1142, %v1283
        %v1295 = vmul.f32 %v1143, %v1287
        %v1296 = vmul.f32 %v1145, %v1275
        %v1297 = vmul.f32 %v1146, %v1279
        %v1298 = vmul.f32 %v1147, %v1283
        %v1299 = vmul.f32 %v1148, %v1287
        %v1300 = vmul.f32 %v1150, %v1275
        %v1301 = vmul.f32 %v1151, %v1279
        %v1302 = vmul.f32 %v1152, %v1283
        %v1303 = vmul.f32 %v1153, %v1287
        %vm1316 = vcmask 1045504
        %v1317 = vrot.slane %v1292, 2
        %v1318 = vrot.slane %v1296, 2
        %v1319 = vsel %vm1316, %v1317, %v1318
        %v1320 = vrot.slane %v1293, 2
        %v1321 = vrot.slane %v1297, 2
        %v1322 = vsel %vm1316, %v1320, %v1321
        %v1323 = vrot.slane %v1294, 2
        %v1324 = vrot.slane %v1298, 2
        %v1325 = vsel %vm1316, %v1323, %v1324
        %v1326 = vrot.slane %v1295, 2
        %v1327 = vrot.slane %v1299, 2
        %v1328 = vsel %vm1316, %v1326, %v1327
        %v1329 = vrot.slane %v1300, 2
        %v1330 = vsel %vm1316, %v1318, %v1329
        %v1331 = vrot.slane %v1301, 2
        %v1332 = vsel %vm1316, %v1321, %v1331
        %v1333 = vrot.slane %v1302, 2
        %v1334 = vsel %vm1316, %v1324, %v1333
        %v1335 = vrot.slane %v1303, 2
        %v1336 = vsel %vm1316, %v1327, %v1335
        %v1345 = vadd.f32 %v1261, %v1319
        %v1346 = vadd.f32 %v1262, %v1322
        %v1347 = vadd.f32 %v1263, %v1325
        %v1348 = vadd.f32 %v1264, %v1328
        %v1349 = vadd.f32 %v1265, %v1330
        %v1350 = vadd.f32 %v1266, %v1332
        %v1351 = vadd.f32 %v1267, %v1334
        %v1352 = vadd.f32 %v1268, %v1336
        %s1353 = scalar_lea.vmem [#allocation13], 5
        %v1354 = vld [vmem:[%s1353] sm:$0x1f]
        %v1356 = vlaneseq
        %v1357 = vshrl.u32 %v1356, 7
        %v1358 = vsub.s32 0, %v1357
        %v1359 = vrot.slane %v1354, %v1358
        %v1360 = vlaneseq
        %v1361 = vshrl.u32 %v1360, 7
        %v1362 = vsub.s32 1, %v1361
        %v1363 = vrot.slane %v1354, %v1362
        %v1364 = vlaneseq
        %v1365 = vshrl.u32 %v1364, 7
        %v1366 = vsub.s32 2, %v1365
        %v1367 = vrot.slane %v1354, %v1366
        %v1368 = vlaneseq
        %v1369 = vshrl.u32 %v1368, 7
        %v1370 = vsub.s32 3, %v1369
        %v1371 = vrot.slane %v1354, %v1370
        %v1372 = vlaneseq
        %v1373 = vshrl.u32 %v1372, 7
        %v1374 = vsub.s32 4, %v1373
        %v1375 = vrot.slane %v1354, %v1374
        %v1381 = vmul.f32 %v1140, %v1359
        %v1382 = vmul.f32 %v1141, %v1363
        %v1383 = vmul.f32 %v1142, %v1367
        %v1384 = vmul.f32 %v1143, %v1371
        %v1385 = vmul.f32 %v1144, %v1375
        %v1386 = vmul.f32 %v1145, %v1359
        %v1387 = vmul.f32 %v1146, %v1363
        %v1388 = vmul.f32 %v1147, %v1367
        %v1389 = vmul.f32 %v1148, %v1371
        %v1390 = vmul.f32 %v1149, %v1375
        %s1391 = scalar_lea.vmem [#allocation13], 20
        %v1392 = vld [vmem:[%s1391] sm:$0x1f]
        %v1394 = vlaneseq
        %v1395 = vshrl.u32 %v1394, 7
        %v1396 = vsub.s32 0, %v1395
        %v1397 = vrot.slane %v1392, %v1396
        %v1398 = vlaneseq
        %v1399 = vshrl.u32 %v1398, 7
        %v1400 = vsub.s32 1, %v1399
        %v1401 = vrot.slane %v1392, %v1400
        %v1402 = vlaneseq
        %v1403 = vshrl.u32 %v1402, 7
        %v1404 = vsub.s32 2, %v1403
        %v1405 = vrot.slane %v1392, %v1404
        %v1406 = vlaneseq
        %v1407 = vshrl.u32 %v1406, 7
        %v1408 = vsub.s32 3, %v1407
        %v1409 = vrot.slane %v1392, %v1408
        %v1410 = vlaneseq
        %v1411 = vshrl.u32 %v1410, 7
        %v1412 = vsub.s32 4, %v1411
        %v1413 = vrot.slane %v1392, %v1412
        %v1419 = vmul.f32 %v1140, %v1397
        %v1420 = vmul.f32 %v1141, %v1401
        %v1421 = vmul.f32 %v1142, %v1405
        %v1422 = vmul.f32 %v1143, %v1409
        %v1423 = vmul.f32 %v1144, %v1413
        %v1424 = vmul.f32 %v1145, %v1397
        %v1425 = vmul.f32 %v1146, %v1401
        %v1426 = vmul.f32 %v1147, %v1405
        %v1427 = vmul.f32 %v1148, %v1409
        %v1428 = vmul.f32 %v1149, %v1413
        %v1429 = vmul.f32 %v1150, %v1397
        %v1430 = vmul.f32 %v1151, %v1401
        %v1431 = vmul.f32 %v1152, %v1405
        %v1432 = vmul.f32 %v1153, %v1409
        %v1433 = vmul.f32 %v1154, %v1413
        %v1449 = vrot.slane %v1419, 1
        %v1450 = vrot.slane %v1424, 1
        %v1451 = vsel %vm1232, %v1449, %v1450
        %v1452 = vrot.slane %v1420, 1
        %v1453 = vrot.slane %v1425, 1
        %v1454 = vsel %vm1232, %v1452, %v1453
        %v1455 = vrot.slane %v1421, 1
        %v1456 = vrot.slane %v1426, 1
        %v1457 = vsel %vm1232, %v1455, %v1456
        %v1458 = vrot.slane %v1422, 1
        %v1459 = vrot.slane %v1427, 1
        %v1460 = vsel %vm1232, %v1458, %v1459
        %v1461 = vrot.slane %v1423, 1
        %v1462 = vrot.slane %v1428, 1
        %v1463 = vsel %vm1232, %v1461, %v1462
        %v1464 = vrot.slane %v1429, 1
        %v1465 = vsel %vm1232, %v1450, %v1464
        %v1466 = vrot.slane %v1430, 1
        %v1467 = vsel %vm1232, %v1453, %v1466
        %v1468 = vrot.slane %v1431, 1
        %v1469 = vsel %vm1232, %v1456, %v1468
        %v1470 = vrot.slane %v1432, 1
        %v1471 = vsel %vm1232, %v1459, %v1470
        %v1472 = vrot.slane %v1433, 1
        %v1473 = vsel %vm1232, %v1462, %v1472
        %v1484 = vadd.f32 %v1381, %v1451
        %v1485 = vadd.f32 %v1382, %v1454
        %v1486 = vadd.f32 %v1383, %v1457
        %v1487 = vadd.f32 %v1384, %v1460
        %v1488 = vadd.f32 %v1385, %v1463
        %v1489 = vadd.f32 %v1386, %v1465
        %v1490 = vadd.f32 %v1387, %v1467
        %v1491 = vadd.f32 %v1388, %v1469
        %v1492 = vadd.f32 %v1389, %v1471
        %v1493 = vadd.f32 %v1390, %v1473
        %s1494 = scalar_lea.vmem [#allocation13], 35
        %v1495 = vld [vmem:[%s1494] sm:$0x1f]
        %v1497 = vlaneseq
        %v1498 = vshrl.u32 %v1497, 7
        %v1499 = vsub.s32 0, %v1498
        %v1500 = vrot.slane %v1495, %v1499
        %v1501 = vlaneseq
        %v1502 = vshrl.u32 %v1501, 7
        %v1503 = vsub.s32 1, %v1502
        %v1504 = vrot.slane %v1495, %v1503
        %v1505 = vlaneseq
        %v1506 = vshrl.u32 %v1505, 7
        %v1507 = vsub.s32 2, %v1506
        %v1508 = vrot.slane %v1495, %v1507
        %v1509 = vlaneseq
        %v1510 = vshrl.u32 %v1509, 7
        %v1511 = vsub.s32 3, %v1510
        %v1512 = vrot.slane %v1495, %v1511
        %v1513 = vlaneseq
        %v1514 = vshrl.u32 %v1513, 7
        %v1515 = vsub.s32 4, %v1514
        %v1516 = vrot.slane %v1495, %v1515
        %v1522 = vmul.f32 %v1140, %v1500
        %v1523 = vmul.f32 %v1141, %v1504
        %v1524 = vmul.f32 %v1142, %v1508
        %v1525 = vmul.f32 %v1143, %v1512
        %v1526 = vmul.f32 %v1144, %v1516
        %v1527 = vmul.f32 %v1145, %v1500
        %v1528 = vmul.f32 %v1146, %v1504
        %v1529 = vmul.f32 %v1147, %v1508
        %v1530 = vmul.f32 %v1148, %v1512
        %v1531 = vmul.f32 %v1149, %v1516
        %v1532 = vmul.f32 %v1150, %v1500
        %v1533 = vmul.f32 %v1151, %v1504
        %v1534 = vmul.f32 %v1152, %v1508
        %v1535 = vmul.f32 %v1153, %v1512
        %v1536 = vmul.f32 %v1154, %v1516
        %v1552 = vrot.slane %v1522, 2
        %v1553 = vrot.slane %v1527, 2
        %v1554 = vsel %vm1316, %v1552, %v1553
        %v1555 = vrot.slane %v1523, 2
        %v1556 = vrot.slane %v1528, 2
        %v1557 = vsel %vm1316, %v1555, %v1556
        %v1558 = vrot.slane %v1524, 2
        %v1559 = vrot.slane %v1529, 2
        %v1560 = vsel %vm1316, %v1558, %v1559
        %v1561 = vrot.slane %v1525, 2
        %v1562 = vrot.slane %v1530, 2
        %v1563 = vsel %vm1316, %v1561, %v1562
        %v1564 = vrot.slane %v1526, 2
        %v1565 = vrot.slane %v1531, 2
        %v1566 = vsel %vm1316, %v1564, %v1565
        %v1567 = vrot.slane %v1532, 2
        %v1568 = vsel %vm1316, %v1553, %v1567
        %v1569 = vrot.slane %v1533, 2
        %v1570 = vsel %vm1316, %v1556, %v1569
        %v1571 = vrot.slane %v1534, 2
        %v1572 = vsel %vm1316, %v1559, %v1571
        %v1573 = vrot.slane %v1535, 2
        %v1574 = vsel %vm1316, %v1562, %v1573
        %v1575 = vrot.slane %v1536, 2
        %v1576 = vsel %vm1316, %v1565, %v1575
        %v1587 = vadd.f32 %v1484, %v1554
        %v1588 = vadd.f32 %v1485, %v1557
        %v1589 = vadd.f32 %v1486, %v1560
        %v1590 = vadd.f32 %v1487, %v1563
        %v1591 = vadd.f32 %v1488, %v1566
        %v1592 = vadd.f32 %v1489, %v1568
        %v1593 = vadd.f32 %v1490, %v1570
        %v1594 = vadd.f32 %v1491, %v1572
        %v1595 = vadd.f32 %v1492, %v1574
        %v1596 = vadd.f32 %v1493, %v1576
        %1607 = vrot.lane.b32.xlu0 %v1587, 96
        %v1608 = vpop.permute.xlu0 %1607
        %1609 = vrot.lane.b32.xlu0 %v1588, 96
        %v1610 = vpop.permute.xlu0 %1609
        %1611 = vrot.lane.b32.xlu0 %v1589, 96
        %v1612 = vpop.permute.xlu0 %1611
        %1613 = vrot.lane.b32.xlu0 %v1590, 96
        %v1614 = vpop.permute.xlu0 %1613
        %1615 = vrot.lane.b32.xlu0 %v1591, 96
        %v1616 = vpop.permute.xlu0 %1615
        %1617 = vrot.lane.b32.xlu0 %v1592, 96
        %v1618 = vpop.permute.xlu0 %1617
        %1619 = vrot.lane.b32.xlu0 %v1593, 96
        %v1620 = vpop.permute.xlu0 %1619
        %1621 = vrot.lane.b32.xlu0 %v1594, 96
        %v1622 = vpop.permute.xlu0 %1621
        %1623 = vrot.lane.b32.xlu0 %v1595, 96
        %v1624 = vpop.permute.xlu0 %1623
        %1625 = vrot.lane.b32.xlu0 %v1596, 96
        %v1626 = vpop.permute.xlu0 %1625
        %vm1627 = vcmask 785408
        %v1628 = vsel %vm1627, %v1608, %v1610
        %v1629 = vsel %vm1627, %v1610, %v1612
        %v1630 = vsel %vm1627, %v1612, %v1614
        %v1631 = vsel %vm1627, %v1614, %v1616
        %v1632 = vsel %vm1627, %v1618, %v1620
        %v1633 = vsel %vm1627, %v1620, %v1622
        %v1634 = vsel %vm1627, %v1622, %v1624
        %v1635 = vsel %vm1627, %v1624, %v1626
        %v1644 = vadd.f32 %v1345, %v1628
        %v1645 = vadd.f32 %v1346, %v1629
        %v1646 = vadd.f32 %v1347, %v1630
        %v1647 = vadd.f32 %v1348, %v1631
        %v1648 = vadd.f32 %v1349, %v1632
        %v1649 = vadd.f32 %v1350, %v1633
        %v1650 = vadd.f32 %v1351, %v1634
        %v1651 = vadd.f32 %v1352, %v1635
        %s1652 = scalar_lea.vmem [#allocation13], 10
        %v1653 = vld [vmem:[%s1652] sm:$0x1f]
        %v1655 = vlaneseq
        %v1656 = vshrl.u32 %v1655, 7
        %v1657 = vsub.s32 0, %v1656
        %v1658 = vrot.slane %v1653, %v1657
        %v1659 = vlaneseq
        %v1660 = vshrl.u32 %v1659, 7
        %v1661 = vsub.s32 1, %v1660
        %v1662 = vrot.slane %v1653, %v1661
        %v1663 = vlaneseq
        %v1664 = vshrl.u32 %v1663, 7
        %v1665 = vsub.s32 2, %v1664
        %v1666 = vrot.slane %v1653, %v1665
        %v1667 = vlaneseq
        %v1668 = vshrl.u32 %v1667, 7
        %v1669 = vsub.s32 3, %v1668
        %v1670 = vrot.slane %v1653, %v1669
        %v1671 = vlaneseq
        %v1672 = vshrl.u32 %v1671, 7
        %v1673 = vsub.s32 4, %v1672
        %v1674 = vrot.slane %v1653, %v1673
        %v1680 = vmul.f32 %v1140, %v1658
        %v1681 = vmul.f32 %v1141, %v1662
        %v1682 = vmul.f32 %v1142, %v1666
        %v1683 = vmul.f32 %v1143, %v1670
        %v1684 = vmul.f32 %v1144, %v1674
        %v1685 = vmul.f32 %v1145, %v1658
        %v1686 = vmul.f32 %v1146, %v1662
        %v1687 = vmul.f32 %v1147, %v1666
        %v1688 = vmul.f32 %v1148, %v1670
        %v1689 = vmul.f32 %v1149, %v1674
        %s1690 = scalar_lea.vmem [#allocation13], 25
        %v1691 = vld [vmem:[%s1690] sm:$0x1f]
        %v1693 = vlaneseq
        %v1694 = vshrl.u32 %v1693, 7
        %v1695 = vsub.s32 0, %v1694
        %v1696 = vrot.slane %v1691, %v1695
        %v1697 = vlaneseq
        %v1698 = vshrl.u32 %v1697, 7
        %v1699 = vsub.s32 1, %v1698
        %v1700 = vrot.slane %v1691, %v1699
        %v1701 = vlaneseq
        %v1702 = vshrl.u32 %v1701, 7
        %v1703 = vsub.s32 2, %v1702
        %v1704 = vrot.slane %v1691, %v1703
        %v1705 = vlaneseq
        %v1706 = vshrl.u32 %v1705, 7
        %v1707 = vsub.s32 3, %v1706
        %v1708 = vrot.slane %v1691, %v1707
        %v1709 = vlaneseq
        %v1710 = vshrl.u32 %v1709, 7
        %v1711 = vsub.s32 4, %v1710
        %v1712 = vrot.slane %v1691, %v1711
        %v1718 = vmul.f32 %v1140, %v1696
        %v1719 = vmul.f32 %v1141, %v1700
        %v1720 = vmul.f32 %v1142, %v1704
        %v1721 = vmul.f32 %v1143, %v1708
        %v1722 = vmul.f32 %v1144, %v1712
        %v1723 = vmul.f32 %v1145, %v1696
        %v1724 = vmul.f32 %v1146, %v1700
        %v1725 = vmul.f32 %v1147, %v1704
        %v1726 = vmul.f32 %v1148, %v1708
        %v1727 = vmul.f32 %v1149, %v1712
        %v1728 = vmul.f32 %v1150, %v1696
        %v1729 = vmul.f32 %v1151, %v1700
        %v1730 = vmul.f32 %v1152, %v1704
        %v1731 = vmul.f32 %v1153, %v1708
        %v1732 = vmul.f32 %v1154, %v1712
        %v1748 = vrot.slane %v1718, 1
        %v1749 = vrot.slane %v1723, 1
        %v1750 = vsel %vm1232, %v1748, %v1749
        %v1751 = vrot.slane %v1719, 1
        %v1752 = vrot.slane %v1724, 1
        %v1753 = vsel %vm1232, %v1751, %v1752
        %v1754 = vrot.slane %v1720, 1
        %v1755 = vrot.slane %v1725, 1
        %v1756 = vsel %vm1232, %v1754, %v1755
        %v1757 = vrot.slane %v1721, 1
        %v1758 = vrot.slane %v1726, 1
        %v1759 = vsel %vm1232, %v1757, %v1758
        %v1760 = vrot.slane %v1722, 1
        %v1761 = vrot.slane %v1727, 1
        %v1762 = vsel %vm1232, %v1760, %v1761
        %v1763 = vrot.slane %v1728, 1
        %v1764 = vsel %vm1232, %v1749, %v1763
        %v1765 = vrot.slane %v1729, 1
        %v1766 = vsel %vm1232, %v1752, %v1765
        %v1767 = vrot.slane %v1730, 1
        %v1768 = vsel %vm1232, %v1755, %v1767
        %v1769 = vrot.slane %v1731, 1
        %v1770 = vsel %vm1232, %v1758, %v1769
        %v1771 = vrot.slane %v1732, 1
        %v1772 = vsel %vm1232, %v1761, %v1771
        %v1783 = vadd.f32 %v1680, %v1750
        %v1784 = vadd.f32 %v1681, %v1753
        %v1785 = vadd.f32 %v1682, %v1756
        %v1786 = vadd.f32 %v1683, %v1759
        %v1787 = vadd.f32 %v1684, %v1762
        %v1788 = vadd.f32 %v1685, %v1764
        %v1789 = vadd.f32 %v1686, %v1766
        %v1790 = vadd.f32 %v1687, %v1768
        %v1791 = vadd.f32 %v1688, %v1770
        %v1792 = vadd.f32 %v1689, %v1772
        %s1793 = scalar_lea.vmem [#allocation13], 40
        %v1794 = vld [vmem:[%s1793] sm:$0x1f]
        %v1796 = vlaneseq
        %v1797 = vshrl.u32 %v1796, 7
        %v1798 = vsub.s32 0, %v1797
        %v1799 = vrot.slane %v1794, %v1798
        %v1800 = vlaneseq
        %v1801 = vshrl.u32 %v1800, 7
        %v1802 = vsub.s32 1, %v1801
        %v1803 = vrot.slane %v1794, %v1802
        %v1804 = vlaneseq
        %v1805 = vshrl.u32 %v1804, 7
        %v1806 = vsub.s32 2, %v1805
        %v1807 = vrot.slane %v1794, %v1806
        %v1808 = vlaneseq
        %v1809 = vshrl.u32 %v1808, 7
        %v1810 = vsub.s32 3, %v1809
        %v1811 = vrot.slane %v1794, %v1810
        %v1812 = vlaneseq
        %v1813 = vshrl.u32 %v1812, 7
        %v1814 = vsub.s32 4, %v1813
        %v1815 = vrot.slane %v1794, %v1814
        %v1821 = vmul.f32 %v1140, %v1799
        %v1822 = vmul.f32 %v1141, %v1803
        %v1823 = vmul.f32 %v1142, %v1807
        %v1824 = vmul.f32 %v1143, %v1811
        %v1825 = vmul.f32 %v1144, %v1815
        %v1826 = vmul.f32 %v1145, %v1799
        %v1827 = vmul.f32 %v1146, %v1803
        %v1828 = vmul.f32 %v1147, %v1807
        %v1829 = vmul.f32 %v1148, %v1811
        %v1830 = vmul.f32 %v1149, %v1815
        %v1831 = vmul.f32 %v1150, %v1799
        %v1832 = vmul.f32 %v1151, %v1803
        %v1833 = vmul.f32 %v1152, %v1807
        %v1834 = vmul.f32 %v1153, %v1811
        %v1835 = vmul.f32 %v1154, %v1815
        %v1851 = vrot.slane %v1821, 2
        %v1852 = vrot.slane %v1826, 2
        %v1853 = vsel %vm1316, %v1851, %v1852
        %v1854 = vrot.slane %v1822, 2
        %v1855 = vrot.slane %v1827, 2
        %v1856 = vsel %vm1316, %v1854, %v1855
        %v1857 = vrot.slane %v1823, 2
        %v1858 = vrot.slane %v1828, 2
        %v1859 = vsel %vm1316, %v1857, %v1858
        %v1860 = vrot.slane %v1824, 2
        %v1861 = vrot.slane %v1829, 2
        %v1862 = vsel %vm1316, %v1860, %v1861
        %v1863 = vrot.slane %v1825, 2
        %v1864 = vrot.slane %v1830, 2
        %v1865 = vsel %vm1316, %v1863, %v1864
        %v1866 = vrot.slane %v1831, 2
        %v1867 = vsel %vm1316, %v1852, %v1866
        %v1868 = vrot.slane %v1832, 2
        %v1869 = vsel %vm1316, %v1855, %v1868
        %v1870 = vrot.slane %v1833, 2
        %v1871 = vsel %vm1316, %v1858, %v1870
        %v1872 = vrot.slane %v1834, 2
        %v1873 = vsel %vm1316, %v1861, %v1872
        %v1874 = vrot.slane %v1835, 2
        %v1875 = vsel %vm1316, %v1864, %v1874
        %v1886 = vadd.f32 %v1783, %v1853
        %v1887 = vadd.f32 %v1784, %v1856
        %v1888 = vadd.f32 %v1785, %v1859
        %v1889 = vadd.f32 %v1786, %v1862
        %v1890 = vadd.f32 %v1787, %v1865
        %v1891 = vadd.f32 %v1788, %v1867
        %v1892 = vadd.f32 %v1789, %v1869
        %v1893 = vadd.f32 %v1790, %v1871
        %v1894 = vadd.f32 %v1791, %v1873
        %v1895 = vadd.f32 %v1792, %v1875
        %1906 = vrot.lane.b32.xlu0 %v1886, 64
        %v1907 = vpop.permute.xlu0 %1906
        %1908 = vrot.lane.b32.xlu0 %v1887, 64
        %v1909 = vpop.permute.xlu0 %1908
        %1910 = vrot.lane.b32.xlu0 %v1888, 64
        %v1911 = vpop.permute.xlu0 %1910
        %1912 = vrot.lane.b32.xlu0 %v1889, 64
        %v1913 = vpop.permute.xlu0 %1912
        %1914 = vrot.lane.b32.xlu0 %v1890, 64
        %v1915 = vpop.permute.xlu0 %1914
        %1916 = vrot.lane.b32.xlu0 %v1891, 64
        %v1917 = vpop.permute.xlu0 %1916
        %1918 = vrot.lane.b32.xlu0 %v1892, 64
        %v1919 = vpop.permute.xlu0 %1918
        %1920 = vrot.lane.b32.xlu0 %v1893, 64
        %v1921 = vpop.permute.xlu0 %1920
        %1922 = vrot.lane.b32.xlu0 %v1894, 64
        %v1923 = vpop.permute.xlu0 %1922
        %1924 = vrot.lane.b32.xlu0 %v1895, 64
        %v1925 = vpop.permute.xlu0 %1924
        %vm1926 = vcmask 523264
        %v1927 = vsel %vm1926, %v1907, %v1909
        %v1928 = vsel %vm1926, %v1909, %v1911
        %v1929 = vsel %vm1926, %v1911, %v1913
        %v1930 = vsel %vm1926, %v1913, %v1915
        %v1931 = vsel %vm1926, %v1917, %v1919
        %v1932 = vsel %vm1926, %v1919, %v1921
        %v1933 = vsel %vm1926, %v1921, %v1923
        %v1934 = vsel %vm1926, %v1923, %v1925
        %v1943 = vadd.f32 %v1644, %v1927
        %v1944 = vadd.f32 %v1645, %v1928
        %v1945 = vadd.f32 %v1646, %v1929
        %v1946 = vadd.f32 %v1647, %v1930
        %v1947 = vadd.f32 %v1648, %v1931
        %v1948 = vadd.f32 %v1649, %v1932
        %v1949 = vadd.f32 %v1650, %v1933
        %v1950 = vadd.f32 %v1651, %v1934
        %v1951 = vld [vmem:[#allocation14] sm:$0xf]
        %v1953 = vlaneseq
        %v1954 = vshrl.u32 %v1953, 7
        %v1955 = vsub.s32 0, %v1954
        %v1956 = vrot.slane %v1951, %v1955
        %v1957 = vlaneseq
        %v1958 = vshrl.u32 %v1957, 7
        %v1959 = vsub.s32 1, %v1958
        %v1960 = vrot.slane %v1951, %v1959
        %v1961 = vlaneseq
        %v1962 = vshrl.u32 %v1961, 7
        %v1963 = vsub.s32 2, %v1962
        %v1964 = vrot.slane %v1951, %v1963
        %v1965 = vlaneseq
        %v1966 = vshrl.u32 %v1965, 7
        %v1967 = vsub.s32 3, %v1966
        %v1968 = vrot.slane %v1951, %v1967
        %v1973 = vmul.f32 %v1943, %v1956
        %v1974 = vmul.f32 %v1944, %v1960
        %v1975 = vmul.f32 %v1945, %v1964
        %v1976 = vmul.f32 %v1946, %v1968
        %v1977 = vmul.f32 %v1947, %v1956
        %v1978 = vmul.f32 %v1948, %v1960
        %v1979 = vmul.f32 %v1949, %v1964
        %v1980 = vmul.f32 %v1950, %v1968
        %v1981 = vld [vmem:[#allocation16] sm:$0xf]
        %v1983 = vlaneseq
        %v1984 = vshrl.u32 %v1983, 7
        %v1985 = vsub.s32 0, %v1984
        %v1986 = vrot.slane %v1981, %v1985
        %v1987 = vlaneseq
        %v1988 = vshrl.u32 %v1987, 7
        %v1989 = vsub.s32 1, %v1988
        %v1990 = vrot.slane %v1981, %v1989
        %v1991 = vlaneseq
        %v1992 = vshrl.u32 %v1991, 7
        %v1993 = vsub.s32 2, %v1992
        %v1994 = vrot.slane %v1981, %v1993
        %v1995 = vlaneseq
        %v1996 = vshrl.u32 %v1995, 7
        %v1997 = vsub.s32 3, %v1996
        %v1998 = vrot.slane %v1981, %v1997
        %v2003 = vadd.f32 %v1973, %v1986
        %v2004 = vadd.f32 %v1974, %v1990
        %v2005 = vadd.f32 %v1975, %v1994
        %v2006 = vadd.f32 %v1976, %v1998
        %v2007 = vadd.f32 %v1977, %v1986
        %v2008 = vadd.f32 %v1978, %v1990
        %v2009 = vadd.f32 %v1979, %v1994
        %v2010 = vadd.f32 %v1980, %v1998
        %vm2011 = vcmp.gt.f32.partialorder %v2003, 0.0
        %vm2012 = vcmp.gt.f32.partialorder %v2004, 0.0
        %vm2013 = vcmp.gt.f32.partialorder %v2005, 0.0
        %vm2014 = vcmp.gt.f32.partialorder %v2006, 0.0
        %vm2015 = vcmp.gt.f32.partialorder %v2007, 0.0
        %vm2016 = vcmp.gt.f32.partialorder %v2008, 0.0
        %vm2017 = vcmp.gt.f32.partialorder %v2009, 0.0
        %vm2018 = vcmp.gt.f32.partialorder %v2010, 0.0
        %v2019 = vld [vmem:[#allocation17] sm:$0xf]
        %v2021 = vlaneseq
        %v2022 = vshrl.u32 %v2021, 7
        %v2023 = vsub.s32 0, %v2022
        %v2024 = vrot.slane %v2019, %v2023
        %v2025 = vlaneseq
        %v2026 = vshrl.u32 %v2025, 7
        %v2027 = vsub.s32 1, %v2026
        %v2028 = vrot.slane %v2019, %v2027
        %v2029 = vlaneseq
        %v2030 = vshrl.u32 %v2029, 7
        %v2031 = vsub.s32 2, %v2030
        %v2032 = vrot.slane %v2019, %v2031
        %v2033 = vlaneseq
        %v2034 = vshrl.u32 %v2033, 7
        %v2035 = vsub.s32 3, %v2034
        %v2036 = vrot.slane %v2019, %v2035
        %v2041 = vmul.f32 %v2024, %v2003
        %v2042 = vmul.f32 %v2028, %v2004
        %v2043 = vmul.f32 %v2032, %v2005
        %v2044 = vmul.f32 %v2036, %v2006
        %v2045 = vmul.f32 %v2024, %v2007
        %v2046 = vmul.f32 %v2028, %v2008
        %v2047 = vmul.f32 %v2032, %v2009
        %v2048 = vmul.f32 %v2036, %v2010
        %v2049 = vsel %vm2011, %v2003, %v2041
        %v2050 = vsel %vm2012, %v2004, %v2042
        %v2051 = vsel %vm2013, %v2005, %v2043
        %v2052 = vsel %vm2014, %v2006, %v2044
        %v2053 = vsel %vm2015, %v2007, %v2045
        %v2054 = vsel %vm2016, %v2008, %v2046
        %v2055 = vsel %vm2017, %v2009, %v2047
        %v2056 = vsel %vm2018, %v2010, %v2048
        %v2057 = vld [vmem:[#allocation19] sm:$0xff]
        %v2058 = vld [vmem:[#allocation19 + $0x8] sm:$0xff]
        %v2059 = vld [vmem:[#allocation19 + $0x10] sm:$0xff]
        %v2060 = vld [vmem:[#allocation19 + $0x18] sm:$0xff]
        %v2061 = vld [vmem:[#allocation19 + $0x20] sm:$0xff]
        %v2062 = vld [vmem:[#allocation19 + $0x28] sm:$0xff]
        %v2063 = vld [vmem:[#allocation19 + $0x30] sm:$0xff]
        %v2064 = vld [vmem:[#allocation19 + $0x38] sm:$0xff]
        %v2065 = vld [vmem:[#allocation19 + $0x40] sm:$0xff]
        %v2066 = vld [vmem:[#allocation19 + $0x48] sm:$0xff]
        %v2067 = vld [vmem:[#allocation19 + $0x50] sm:$0xff]
        %v2068 = vld [vmem:[#allocation19 + $0x58] sm:$0xff]
        %v2069 = vld [vmem:[#allocation19 + $0x60] sm:$0xff]
        %v2070 = vld [vmem:[#allocation19 + $0x68] sm:$0xff]
        %v2071 = vld [vmem:[#allocation19 + $0x70] sm:$0xff]
        %v2072 = vld [vmem:[#allocation19 + $0x78] sm:$0xff]
        %v2073 = vld [vmem:[#allocation19 + $0x80] sm:$0xff]
        %v2074 = vld [vmem:[#allocation19 + $0x88] sm:$0xff]
        %v2075 = vld [vmem:[#allocation19 + $0x90] sm:$0xff]
        %v2076 = vld [vmem:[#allocation19 + $0x98] sm:$0xff]
        %v2077 = vld [vmem:[#allocation19 + $0xa0] sm:$0xff]
        %v2078 = vld [vmem:[#allocation19 + $0xa8] sm:$0xff]
        %v2079 = vld [vmem:[#allocation19 + $0xb0] sm:$0xff]
        %v2080 = vld [vmem:[#allocation19 + $0xb8] sm:$0xff]
        %v2081 = vld [vmem:[#allocation19 + $0xc0] sm:$0xff]
        %v2082 = vld [vmem:[#allocation19 + $0xc8] sm:$0xff]
        %v2083 = vld [vmem:[#allocation19 + $0xd0] sm:$0xff]
        %v2084 = vld [vmem:[#allocation19 + $0xd8] sm:$0xff]
        %v2085 = vld [vmem:[#allocation19 + $0xe0] sm:$0xff]
        %v2086 = vld [vmem:[#allocation19 + $0xe8] sm:$0xff]
        %v2087 = vld [vmem:[#allocation19 + $0xf0] sm:$0xff]
        %v2088 = vld [vmem:[#allocation19 + $0xf8] sm:$0xff]
        %v2089 = vld [vmem:[#allocation19 + $0x100] sm:$0xff]
        %v2090 = vld [vmem:[#allocation19 + $0x108] sm:$0xff]
        %v2091 = vld [vmem:[#allocation19 + $0x110] sm:$0xff]
        %v2092 = vld [vmem:[#allocation19 + $0x118] sm:$0xff]
        %v2093 = vld [vmem:[#allocation19 + $0x120] sm:$0xff]
        %v2094 = vld [vmem:[#allocation19 + $0x128] sm:$0xff]
        %v2095 = vld [vmem:[#allocation19 + $0x130] sm:$0xff]
        %v2096 = vld [vmem:[#allocation19 + $0x138] sm:$0xff]
        %v2097 = vld [vmem:[#allocation19 + $0x140] sm:$0xff]
        %v2098 = vld [vmem:[#allocation19 + $0x148] sm:$0xff]
        %v2099 = vld [vmem:[#allocation19 + $0x150] sm:$0xff]
        %v2100 = vld [vmem:[#allocation19 + $0x158] sm:$0xff]
        %v2101 = vld [vmem:[#allocation19 + $0x160] sm:$0xff]
        %v2102 = vld [vmem:[#allocation19 + $0x168] sm:$0xff]
        %v2103 = vld [vmem:[#allocation19 + $0x170] sm:$0xff]
        %v2104 = vld [vmem:[#allocation19 + $0x178] sm:$0xff]
        %v2105 = vld [vmem:[#allocation19 + $0x180] sm:$0xff]
        %v2106 = vld [vmem:[#allocation19 + $0x188] sm:$0xff]
        %v2107 = vld [vmem:[#allocation19 + $0x190] sm:$0xff]
        %v2108 = vld [vmem:[#allocation19 + $0x198] sm:$0xff]
        %v2109 = vld [vmem:[#allocation19 + $0x1a0] sm:$0xff]
        %v2110 = vld [vmem:[#allocation19 + $0x1a8] sm:$0xff]
        %v2111 = vld [vmem:[#allocation19 + $0x1b0] sm:$0xff]
        %v2112 = vld [vmem:[#allocation19 + $0x1b8] sm:$0xff]
        %v2113 = vld [vmem:[#allocation19 + $0x1c0] sm:$0xff]
        %v2114 = vld [vmem:[#allocation19 + $0x1c8] sm:$0xff]
        %v2115 = vld [vmem:[#allocation19 + $0x1d0] sm:$0xff]
        %v2116 = vld [vmem:[#allocation19 + $0x1d8] sm:$0xff]
        %v2117 = vld [vmem:[#allocation19 + $0x1e0] sm:$0xff]
        %v2118 = vld [vmem:[#allocation19 + $0x1e8] sm:$0xff]
        %v2119 = vld [vmem:[#allocation19 + $0x1f0] sm:$0xff]
        %v2120 = vld [vmem:[#allocation19 + $0x1f8] sm:$0xff]
        %2121 = vmatprep.subr.mxu0 0.0
        %2122 = vmatpush1.msra.mxu0 %v2057
        %2123 = vmatprep.subr.mxu0 0.0
        %2124 = vmatpush1.msra.mxu0 %v2058
        %2125 = vmatprep.subr.mxu0 0.0
        %2126 = vmatpush1.msra.mxu0 %v2059
        %2127 = vmatprep.subr.mxu0 0.0
        %2128 = vmatpush1.msra.mxu0 %v2060
        %2129 = vmatprep.subr.mxu0 0.0
        %2130 = vmatpush1.msra.mxu0 %v2061
        %2131 = vmatprep.subr.mxu0 0.0
        %2132 = vmatpush1.msra.mxu0 %v2062
        %2133 = vmatprep.subr.mxu0 0.0
        %2134 = vmatpush1.msra.mxu0 %v2063
        %2135 = vmatprep.subr.mxu0 0.0
        %2136 = vmatpush1.msra.mxu0 %v2064
        %2137 = vmatprep.subr.mxu0 0.0
        %2138 = vmatpush1.msra.mxu0 %v2065
        %2139 = vmatprep.subr.mxu0 0.0
        %2140 = vmatpush1.msra.mxu0 %v2066
        %2141 = vmatprep.subr.mxu0 0.0
        %2142 = vmatpush1.msra.mxu0 %v2067
        %2143 = vmatprep.subr.mxu0 0.0
        %2144 = vmatpush1.msra.mxu0 %v2068
        %2145 = vmatprep.subr.mxu0 0.0
        %2146 = vmatpush1.msra.mxu0 %v2069
        %2147 = vmatprep.subr.mxu0 0.0
        %2148 = vmatpush1.msra.mxu0 %v2070
        %2149 = vmatprep.subr.mxu0 0.0
        %2150 = vmatpush1.msra.mxu0 %v2071
        %2151 = vmatprep.subr.mxu0 0.0
        %2152 = vmatpush1.msra.mxu0 %v2072
        %2153 = vmatprep.subr.mxu0 0.0
        %2154 = vmatpush1.msra.mxu0 %v2073
        %2155 = vmatprep.subr.mxu0 0.0
        %2156 = vmatpush1.msra.mxu0 %v2074
        %2157 = vmatprep.subr.mxu0 0.0
        %2158 = vmatpush1.msra.mxu0 %v2075
        %2159 = vmatprep.subr.mxu0 0.0
        %2160 = vmatpush1.msra.mxu0 %v2076
        %2161 = vmatprep.subr.mxu0 0.0
        %2162 = vmatpush1.msra.mxu0 %v2077
        %2163 = vmatprep.subr.mxu0 0.0
        %2164 = vmatpush1.msra.mxu0 %v2078
        %2165 = vmatprep.subr.mxu0 0.0
        %2166 = vmatpush1.msra.mxu0 %v2079
        %2167 = vmatprep.subr.mxu0 0.0
        %2168 = vmatpush1.msra.mxu0 %v2080
        %2169 = vmatprep.subr.mxu0 0.0
        %2170 = vmatpush1.msra.mxu0 %v2081
        %2171 = vmatprep.subr.mxu0 0.0
        %2172 = vmatpush1.msra.mxu0 %v2082
        %2173 = vmatprep.subr.mxu0 0.0
        %2174 = vmatpush1.msra.mxu0 %v2083
        %2175 = vmatprep.subr.mxu0 0.0
        %2176 = vmatpush1.msra.mxu0 %v2084
        %2177 = vmatprep.subr.mxu0 0.0
        %2178 = vmatpush1.msra.mxu0 %v2085
        %2179 = vmatprep.subr.mxu0 0.0
        %2180 = vmatpush1.msra.mxu0 %v2086
        %2181 = vmatprep.subr.mxu0 0.0
        %2182 = vmatpush1.msra.mxu0 %v2087
        %2183 = vmatprep.subr.mxu0 0.0
        %2184 = vmatpush1.msra.mxu0 %v2088
        %2185 = vmatprep.mubr.f32.mxu0 %v2050
        %2186 = vmatmul.mubr.f32.gmra.mrb[0].mxu0 %v2049
        %v2187 = vpop.f32.mrb[0].mxu0
        %v2188 = vadd.f32 0.0, %v2187
        %v2189 = vpop.f32.mrb[0].mxu0
        %2190 = vmatprep.mubr.f32.mxu0 %v2054
        %2191 = vmatmul.mubr.f32.gmra.mrb[0].mxu0 %v2053
        %v2192 = vpop.f32.mrb[0].mxu0
        %v2193 = vadd.f32 0.0, %v2192
        %v2194 = vpop.f32.mrb[0].mxu0
        %2195 = vdwg.mxu0
        %2196 = vmatprep.subr.mxu0 0.0
        %2197 = vmatpush1.msra.mxu0 %v2089
        %2198 = vmatprep.subr.mxu0 0.0
        %2199 = vmatpush1.msra.mxu0 %v2090
        %2200 = vmatprep.subr.mxu0 0.0
        %2201 = vmatpush1.msra.mxu0 %v2091
        %2202 = vmatprep.subr.mxu0 0.0
        %2203 = vmatpush1.msra.mxu0 %v2092
        %2204 = vmatprep.subr.mxu0 0.0
        %2205 = vmatpush1.msra.mxu0 %v2093
        %2206 = vmatprep.subr.mxu0 0.0
        %2207 = vmatpush1.msra.mxu0 %v2094
        %2208 = vmatprep.subr.mxu0 0.0
        %2209 = vmatpush1.msra.mxu0 %v2095
        %2210 = vmatprep.subr.mxu0 0.0
        %2211 = vmatpush1.msra.mxu0 %v2096
        %2212 = vmatprep.subr.mxu0 0.0
        %2213 = vmatpush1.msra.mxu0 %v2097
        %2214 = vmatprep.subr.mxu0 0.0
        %2215 = vmatpush1.msra.mxu0 %v2098
        %2216 = vmatprep.subr.mxu0 0.0
        %2217 = vmatpush1.msra.mxu0 %v2099
        %2218 = vmatprep.subr.mxu0 0.0
        %2219 = vmatpush1.msra.mxu0 %v2100
        %2220 = vmatprep.subr.mxu0 0.0
        %2221 = vmatpush1.msra.mxu0 %v2101
        %2222 = vmatprep.subr.mxu0 0.0
        %2223 = vmatpush1.msra.mxu0 %v2102
        %2224 = vmatprep.subr.mxu0 0.0
        %2225 = vmatpush1.msra.mxu0 %v2103
        %2226 = vmatprep.subr.mxu0 0.0
        %2227 = vmatpush1.msra.mxu0 %v2104
        %2228 = vmatprep.subr.mxu0 0.0
        %2229 = vmatpush1.msra.mxu0 %v2105
        %2230 = vmatprep.subr.mxu0 0.0
        %2231 = vmatpush1.msra.mxu0 %v2106
        %2232 = vmatprep.subr.mxu0 0.0
        %2233 = vmatpush1.msra.mxu0 %v2107
        %2234 = vmatprep.subr.mxu0 0.0
        %2235 = vmatpush1.msra.mxu0 %v2108
        %2236 = vmatprep.subr.mxu0 0.0
        %2237 = vmatpush1.msra.mxu0 %v2109
        %2238 = vmatprep.subr.mxu0 0.0
        %2239 = vmatpush1.msra.mxu0 %v2110
        %2240 = vmatprep.subr.mxu0 0.0
        %2241 = vmatpush1.msra.mxu0 %v2111
        %2242 = vmatprep.subr.mxu0 0.0
        %2243 = vmatpush1.msra.mxu0 %v2112
        %2244 = vmatprep.subr.mxu0 0.0
        %2245 = vmatpush1.msra.mxu0 %v2113
        %2246 = vmatprep.subr.mxu0 0.0
        %2247 = vmatpush1.msra.mxu0 %v2114
        %2248 = vmatprep.subr.mxu0 0.0
        %2249 = vmatpush1.msra.mxu0 %v2115
        %2250 = vmatprep.subr.mxu0 0.0
        %2251 = vmatpush1.msra.mxu0 %v2116
        %2252 = vmatprep.subr.mxu0 0.0
        %2253 = vmatpush1.msra.mxu0 %v2117
        %2254 = vmatprep.subr.mxu0 0.0
        %2255 = vmatpush1.msra.mxu0 %v2118
        %2256 = vmatprep.subr.mxu0 0.0
        %2257 = vmatpush1.msra.mxu0 %v2119
        %2258 = vmatprep.subr.mxu0 0.0
        %2259 = vmatpush1.msra.mxu0 %v2120
        %2260 = vmatprep.mubr.f32.mxu0 %v2052
        %2261 = vmatmul.mubr.f32.gmra.mrb[0].mxu0 %v2051
        %v2262 = vpop.f32.mrb[0].mxu0
        %v2263 = vadd.f32 %v2188, %v2262
        %v2264 = vpop.f32.mrb[0].mxu0
        %2265 = vmatprep.mubr.f32.mxu0 %v2056
        %2266 = vmatmul.mubr.f32.gmra.mrb[0].mxu0 %v2055
        %v2267 = vpop.f32.mrb[0].mxu0
        %v2268 = vadd.f32 %v2193, %v2267
        %v2269 = vpop.f32.mrb[0].mxu0
        %2270 = vdwg.mxu0
        %v2271 = vld [vmem:[#allocation20] sm:$0x1]
        %v2273 = vlaneseq
        %v2274 = vshrl.u32 %v2273, 7
        %v2275 = vsub.s32 0, %v2274
        %v2276 = vrot.slane %v2271, %v2275
        %v2278 = vmul.f32 %v2263, %v2276
        %v2279 = vmul.f32 %v2268, %v2276
        %v2280 = vld [vmem:[#allocation22] sm:$0x1]
        %v2282 = vlaneseq
        %v2283 = vshrl.u32 %v2282, 7
        %v2284 = vsub.s32 0, %v2283
        %v2285 = vrot.slane %v2280, %v2284
        %v2287 = vadd.f32 %v2278, %v2285
        %v2288 = vadd.f32 %v2279, %v2285
        %v2292 = vrot.slane %v617, 1
        %v2293 = vrot.slane %v619, 1
        %v2294 = vsel %vm1232, %v2292, %v2293
        %v2295 = vrot.slane %v618, 1
        %v2296 = vrot.slane %v620, 1
        %v2297 = vsel %vm1232, %v2295, %v2296
        %v2298 = vrot.slane %v621, 1
        %v2299 = vsel %vm1232, %v2293, %v2298
        %v2300 = vrot.slane %v622, 1
        %v2301 = vsel %vm1232, %v2296, %v2300
        %2302 = vrot.lane.b32.xlu0 %v2294, 120
        %v2303 = vpop.permute.xlu0 %2302
        %2304 = vrot.lane.b32.xlu0 %v2297, 120
        %v2305 = vpop.permute.xlu0 %2304
        %2306 = vrot.lane.b32.xlu0 %v2299, 120
        %v2307 = vpop.permute.xlu0 %2306
        %2308 = vrot.lane.b32.xlu0 %v2301, 120
        %v2309 = vpop.permute.xlu0 %2308
        %vm2310 = vcmask 982016
        %v2311 = vsel %vm2310, %v2303, %v2305
        %v2312 = vsel %vm2310, %v2307, %v2309
        %v2315 = vadd.f32 %v2287, %v2311
        %v2316 = vadd.f32 %v2288, %v2312
        %2317 = vst [vmem:[%s616] sm:$0xff] %v2315
        %2318 = vst [vmem:[%s616 + $0x8] sm:$0xff] %v2316
        %s2319 = sand.u32 %s322, 1
        %s2320 = scalar_lea.sflag [#allocation4], %s2319
        %s2321 = sand.u32 %s322, 1
        %s2322 = smul.addr %s2321, 16
        %s2323 = scalar_lea.vmem [#allocation23], %s2322
        // Predicated region
        $region125: #{tpu_custom_call.1} parent=71 // pred_check
          %p2324 = pneg %p332
        $region126: #{tpu_custom_call.1} parent=71 // pred_check_branch
          %2326 = sbr.rel (%p2324) target = $region128
        $region127: #{tpu_custom_call.1} parent=71 // pred_region
          %s2328 = ssub.s32 256, 256
          %2329 = vsyncadd %s2320, %s2328
          %s2330 = smul.addr %s36, 2
          %s2331 = smul.addr %s2330, 128
          %s2332 = scalar_lea.hbm %s13, %s2331
          %s2333 = sshll.u32 %s2323, 4
          %s2334 = int_to_ptr.vmem [resolvable:$true] %s2333
          %2339 = dma.vmem_to_hbm [thread:$0]  %s2334, 256, %s2332, %s2320, 128, 128, 8
        $region128: #{tpu_custom_call.1} parent=71 // pred_fallthru
          _
      $region72: #{tpu_custom_call.1} parent=5 // pred_fallthru
        _
      %p2340 = scmp.le.s32.totalorder 2, %s31
      // Predicated region
      $region129: #{tpu_custom_call.1} parent=5 // pred_check
        %p2341 = pneg %p2340
      $region130: #{tpu_custom_call.1} parent=5 // pred_check_branch
        %2343 = sbr.rel (%p2341) target = $region132
      $region131: #{tpu_custom_call.1} parent=5 // pred_region
        %s2344 = ssub.s32 %s31, 2
        // Predicated region
        $region133: #{tpu_custom_call.1} parent=131 // pred_check
          %p2345 = pneg %p338
        $region134: #{tpu_custom_call.1} parent=131 // pred_check_branch
          %2347 = sbr.rel (%p2345) target = $region136
        $region135: #{tpu_custom_call.1} parent=131 // pred_region
          %s2348 = sand.u32 %s323, 1
          %s2349 = scalar_lea.sflag [#allocation4], %s2348
          %s2350 = sand.u32 %s323, 1
          %s2351 = smul.addr %s2350, 16
          %s2352 = scalar_lea.vmem [#allocation23], %s2351
          %2353 = dma.done %s2349, 256
        $region136: #{tpu_custom_call.1} parent=131 // pred_fallthru
          _
      $region132: #{tpu_custom_call.1} parent=5 // pred_fallthru
        _
    $region6: #{tpu_custom_call.1} parent=1 // loop_footer
      %s35 = sadd.s32 1, %s31
    $region7: #{tpu_custom_call.1} parent=1 // loop_footer_branch
      %30 = sbr.rel target = $region3
    $region8: #{tpu_custom_call.1} parent=1 // loop_exit
      _
    %2354 = vsyncpa [#allocation3], 1
    %s2355 = scalar_lea.sflag [#allocation3], 1
    %2356 = vsyncpa %s2355, 1
    %2357 = vsyncpa [#allocation6], 1
    %2358 = vsyncpa [#allocation9], 1
    %2359 = vsyncpa [#allocation12], 1
    %2360 = vsyncpa [#allocation15], 1
    %2361 = vsyncpa [#allocation18], 1
    %2362 = vsyncpa [#allocation21], 1
    %2363 = vsyncpa [#allocation4], 1
    %s2364 = scalar_lea.sflag [#allocation4], 1
    %2365 = vsyncpa %s2364, 1

</llo_original>
